<compile_context>
chip_gen: v7x
topology: tpu7x:2x2x1
jax: 0.10.0
libtpu: 0.0.40
codegen_flags: <defaults>
</compile_context>

<pallas_src>
import functools

import jax
import jax.numpy as jnp
from jax.experimental import pallas as pl
from jax.experimental.pallas import tpu as pltpu

# Module-consistent sizes (the original uses n_points = 500).
N_POINTS = 500
EMBED_DIM = 128


def _round_up(x: int, mult: int) -> int:
    return ((x + mult - 1) // mult) * mult


def _cdiv(a: int, b: int) -> int:
    return (a + b - 1) // b


def _mlp_kernel(x_ref, w1_ref, b_ref, w2_ref, w3_ref, o_ref):
    # In-kernel f32 -> bf16 cast of the row tile (saves a whole extra HBM pass
    # versus casting in the wrapper); all matmuls accumulate in f32 on the MXU.
    x = x_ref[...].astype(jnp.bfloat16)

    # layer 1: (tm, K=500) bf16 @ (500, E) bf16 -> f32 (Mosaic pads K internally)
    h = jnp.dot(x, w1_ref[...], preferred_element_type=jnp.float32)
    h = jnp.maximum(h + b_ref[0:1, :], 0.0)

    # layer 2: (tm, E) @ (E, E) -> f32
    h = jnp.dot(h.astype(jnp.bfloat16), w2_ref[...],
                preferred_element_type=jnp.float32)
    h = jnp.maximum(h + b_ref[1:2, :], 0.0)

    # layer 3: (tm, E) @ (E, E) -> f32, bias only (no ReLU)
    h = jnp.dot(h.astype(jnp.bfloat16), w3_ref[...],
                preferred_element_type=jnp.float32)
    h = h + b_ref[2:3, :]

    o_ref[...] = h.astype(o_ref.dtype)


@functools.partial(jax.jit, static_argnames=("tm", "out_dtype"))
def mc_init_embedding(distances, params, *, tm: int = 1024, out_dtype=jnp.float32):
    """Fused 3-layer MLP over the last axis of `distances`.

    distances: (..., n_points) float32
    params: dict with w1 (emb, n_points), b1 (emb,), w2/w3 (emb, emb), b2/b3 (emb,)
            (PyTorch nn.Linear layout: weight is (out_features, in_features)).
    returns: (..., emb) in `out_dtype` (default float32, matching the module).
    """
    n_points = distances.shape[-1]
    emb = params["w1"].shape[0]

    lead_shape = distances.shape[:-1]
    x = distances.reshape(-1, n_points).astype(jnp.float32)
    m = x.shape[0]

    # --- tiling: pad M only to a multiple of 128 (not of the tile), and pick a
    # row tile giving >= 4 grid steps (v7x megacore + pipeline) without
    # exceeding the requested tm.  Padded rows are zeros and sliced off below.
    m_128 = _round_up(max(m, 1), 128)
    max_tile_for_steps = _round_up(_cdiv(m_128, 4), 128)
    tm_eff = max(128, min(_round_up(tm, 128), max_tile_for_steps))
    m_pad = _round_up(m_128, tm_eff)
    grid = (m_pad // tm_eff,)

    x = jnp.pad(x, ((0, m_pad - m), (0, 0)))     # M-pad only; no K pad, no cast

    # Weights transposed once in glue (x @ W^T layout -> lane-dense E=128 output),
    # cast to bf16.  The three biases are fused into a single (3, E) f32 block.
    w1t = params["w1"].T.astype(jnp.bfloat16)            # (n_points, emb)
    w2t = params["w2"].T.astype(jnp.bfloat16)            # (emb, emb)
    w3t = params["w3"].T.astype(jnp.bfloat16)            # (emb, emb)
    b_all = jnp.stack(
        [params["b1"], params["b2"], params["b3"]], axis=0
    ).astype(jnp.float32)                                 # (3, emb)

    # Explicit VMEM budget: double-buffered f32 x tiles + out tiles, resident
    # (but double-buffered) weights, plus f32 intermediates.  Cap at 48 MiB so
    # big-tm sweeps still fit v7x's 64 MiB physical VMEM.
    out_bytes = jnp.dtype(out_dtype).itemsize
    bytes_x = 2 * tm_eff * n_points * 4
    bytes_out = 2 * tm_eff * emb * out_bytes
    bytes_w = 2 * (n_points * emb + 2 * emb * emb) * 2 + 2 * 3 * emb * 4
    bytes_h = 3 * tm_eff * emb * 4
    vmem_limit = int(1.5 * (bytes_x + bytes_out + bytes_w + bytes_h)) + (4 << 20)
    vmem_limit = max(vmem_limit, 16 << 20)
    vmem_limit = min(vmem_limit, 48 << 20)

    resident = lambda shape: pl.BlockSpec(shape, lambda i: (0, 0))

    out = pl.pallas_call(
        _mlp_kernel,
        out_shape=jax.ShapeDtypeStruct((m_pad, emb), out_dtype),
        grid_spec=pltpu.PrefetchScalarGridSpec(
            num_scalar_prefetch=0,
            grid=grid,
            in_specs=[
                pl.BlockSpec((tm_eff, n_points), lambda i: (i, 0)),  # raw f32 rows
                resident((n_points, emb)),    # W1^T (resident in VMEM)
                resident((3, emb)),           # fused biases (f32)
                resident((emb, emb)),         # W2^T
                resident((emb, emb)),         # W3^T
            ],
            out_specs=pl.BlockSpec((tm_eff, emb), lambda i: (i, 0)),
        ),
        compiler_params=pltpu.CompilerParams(
            dimension_semantics=("parallel",),
            vmem_limit_bytes=vmem_limit,
        ),
    )(x, w1t, b_all, w2t, w3t)

    out = out[:m]
    return out.reshape(*lead_shape, emb)


def init_params(key, n_points, emb):
    """Deterministic init mirroring PyTorch nn.Linear default (uniform +-1/sqrt(fan_in))."""
    ks = jax.random.split(key, 6)

    def linear(kw, kb, fan_in, fan_out):
        bound = 1.0 / jnp.sqrt(fan_in)
        w = jax.random.uniform(kw, (fan_out, fan_in), jnp.float32, -bound, bound)
        b = jax.random.uniform(kb, (fan_out,), jnp.float32, -bound, bound)
        return w, b

    w1, b1 = linear(ks[0], ks[1], n_points, emb)
    w2, b2 = linear(ks[2], ks[3], emb, emb)
    w3, b3 = linear(ks[4], ks[5], emb, emb)
    return {"w1": w1, "b1": b1, "w2": w2, "b2": b2, "w3": w3, "b3": b3}


def reference_f32(distances, p):
    h = jnp.maximum(distances @ p["w1"].T + p["b1"], 0.0)
    h = jnp.maximum(h @ p["w2"].T + p["b2"], 0.0)
    return h @ p["w3"].T + p["b3"]


def reference_bf16(distances, p):
    """Mirrors the kernel numerics: bf16 operands, f32 MXU accumulation."""
    lead = distances.shape[:-1]
    x = distances.reshape(-1, distances.shape[-1]).astype(jnp.bfloat16)
    h = jnp.dot(x, p["w1"].T.astype(jnp.bfloat16),
                preferred_element_type=jnp.float32) + p["b1"]
    h = jnp.maximum(h, 0.0)
    h = jnp.dot(h.astype(jnp.bfloat16), p["w2"].T.astype(jnp.bfloat16),
                preferred_element_type=jnp.float32) + p["b2"]
    h = jnp.maximum(h, 0.0)
    h = jnp.dot(h.astype(jnp.bfloat16), p["w3"].T.astype(jnp.bfloat16),
                preferred_element_type=jnp.float32) + p["b3"]
    return h.reshape(*lead, -1)


if __name__ == "__main__":
    key = jax.random.PRNGKey(0)
    k_x, k_p = jax.random.split(key)

    batch = 2
    # distances: (batch, n_points, n_points), as in the facility-location env.
    # m = 1000 rows -> padded to 1024, tile 256, grid of 4 steps (both v7x TCs).
    distances = jax.random.uniform(k_x, (batch, N_POINTS, N_POINTS), jnp.float32)

    params = init_params(k_p, N_POINTS, EMBED_DIM)

    out = mc_init_embedding(distances, params)
    out = jax.block_until_ready(out)
    assert out.shape == (batch, N_POINTS, EMBED_DIM)

    # Numerics check vs a reference with matching bf16-operand / f32-accum math.
    ref = reference_bf16(distances, params)
    assert jnp.allclose(out, ref, atol=1e-2, rtol=1e-2), "mismatch vs bf16 reference"

    # Sanity check vs the full-f32 PyTorch-equivalent reference (looser: bf16 rounding).
    ref32 = reference_f32(distances, params)
    max_abs = float(jnp.max(jnp.abs(out - ref32)))
    assert max_abs < 0.1, f"too far from f32 reference: {max_abs}"

    print("KERNEL_OK")
</pallas_src>

<mosaic_0001>
module attributes {stable_mosaic.version = 11 : i64} {
  func.func @_mlp_kernel(%arg0: i32, %arg1: memref<256x500xf32, #tpu.memory_space<vmem>>, %arg2: memref<500x128xbf16, #tpu.memory_space<vmem>>, %arg3: memref<3x128xf32, #tpu.memory_space<vmem>>, %arg4: memref<128x128xbf16, #tpu.memory_space<vmem>>, %arg5: memref<128x128xbf16, #tpu.memory_space<vmem>>, %arg6: memref<256x128xf32, #tpu.memory_space<vmem>>) attributes {dimension_semantics = [#tpu.dimension_semantics<parallel>], iteration_bounds = array<i64: 4>, scalar_prefetch = 0 : i64, scratch_operands = 0 : i64, tpu.core_type = #tpu.core_type<tc>, window_params = [{transform_indices = @transform_0, window_bounds = array<i64: 256, 500>}, {pipeline_mode = #tpu.pipeline_mode<synchronous>, transform_indices = @transform_1, window_bounds = array<i64: 500, 128>}, {pipeline_mode = #tpu.pipeline_mode<synchronous>, transform_indices = @transform_2, window_bounds = array<i64: 3, 128>}, {pipeline_mode = #tpu.pipeline_mode<synchronous>, transform_indices = @transform_3, window_bounds = array<i64: 128, 128>}, {pipeline_mode = #tpu.pipeline_mode<synchronous>, transform_indices = @transform_4, window_bounds = array<i64: 128, 128>}, {transform_indices = @transform_5, window_bounds = array<i64: 256, 128>}]} {
    %c0 = arith.constant 0 : index
    %c0_0 = arith.constant 0 : index
    %0 = vector.load %arg1[%c0, %c0_0] : memref<256x500xf32, #tpu.memory_space<vmem>>, vector<256x500xf32>
    %1 = arith.truncf %0 : vector<256x500xf32> to vector<256x500xbf16>
    %c0_1 = arith.constant 0 : index
    %c0_2 = arith.constant 0 : index
    %2 = vector.load %arg2[%c0_1, %c0_2] : memref<500x128xbf16, #tpu.memory_space<vmem>>, vector<500x128xbf16>
    %cst = arith.constant dense<0.000000e+00> : vector<256x128xf32>
    %3 = tpu.matmul %1, %2, %cst {dimension_numbers = #tpu.dot_dimension_numbers<[1], [0], [0], [1], [0, 0, 1, 1], [], []>} : vector<256x500xbf16>, vector<500x128xbf16>, vector<256x128xf32> -> vector<256x128xf32>
    %c0_3 = arith.constant 0 : index
    %c0_4 = arith.constant 0 : index
    %4 = vector.load %arg3[%c0_3, %c0_4] : memref<3x128xf32, #tpu.memory_space<vmem>>, vector<1x128xf32>
    %5 = vector.broadcast %4 : vector<1x128xf32> to vector<256x128xf32>
    %6 = arith.addf %3, %5 : vector<256x128xf32>
    %cst_5 = arith.constant 0.000000e+00 : f32
    %7 = vector.broadcast %cst_5 : f32 to vector<256x128xf32>
    %8 = arith.maximumf %6, %7 : vector<256x128xf32>
    %9 = arith.truncf %8 : vector<256x128xf32> to vector<256x128xbf16>
    %c0_6 = arith.constant 0 : index
    %c0_7 = arith.constant 0 : index
    %10 = vector.load %arg4[%c0_6, %c0_7] : memref<128x128xbf16, #tpu.memory_space<vmem>>, vector<128x128xbf16>
    %cst_8 = arith.constant dense<0.000000e+00> : vector<256x128xf32>
    %11 = tpu.matmul %9, %10, %cst_8 {dimension_numbers = #tpu.dot_dimension_numbers<[1], [0], [0], [1], [0, 0, 1, 1], [], []>} : vector<256x128xbf16>, vector<128x128xbf16>, vector<256x128xf32> -> vector<256x128xf32>
    %c1 = arith.constant 1 : index
    %c0_9 = arith.constant 0 : index
    %12 = vector.load %arg3[%c1, %c0_9] : memref<3x128xf32, #tpu.memory_space<vmem>>, vector<1x128xf32>
    %13 = vector.broadcast %12 : vector<1x128xf32> to vector<256x128xf32>
    %14 = arith.addf %11, %13 : vector<256x128xf32>
    %cst_10 = arith.constant 0.000000e+00 : f32
    %15 = vector.broadcast %cst_10 : f32 to vector<256x128xf32>
    %16 = arith.maximumf %14, %15 : vector<256x128xf32>
    %17 = arith.truncf %16 : vector<256x128xf32> to vector<256x128xbf16>
    %c0_11 = arith.constant 0 : index
    %c0_12 = arith.constant 0 : index
    %18 = vector.load %arg5[%c0_11, %c0_12] : memref<128x128xbf16, #tpu.memory_space<vmem>>, vector<128x128xbf16>
    %cst_13 = arith.constant dense<0.000000e+00> : vector<256x128xf32>
    %19 = tpu.matmul %17, %18, %cst_13 {dimension_numbers = #tpu.dot_dimension_numbers<[1], [0], [0], [1], [0, 0, 1, 1], [], []>} : vector<256x128xbf16>, vector<128x128xbf16>, vector<256x128xf32> -> vector<256x128xf32>
    %c2 = arith.constant 2 : index
    %c0_14 = arith.constant 0 : index
    %20 = vector.load %arg3[%c2, %c0_14] : memref<3x128xf32, #tpu.memory_space<vmem>>, vector<1x128xf32>
    %21 = vector.broadcast %20 : vector<1x128xf32> to vector<256x128xf32>
    %22 = arith.addf %19, %21 : vector<256x128xf32>
    %c0_15 = arith.constant 0 : index
    %c0_16 = arith.constant 0 : index
    %23 = vector.load %arg6[%c0_15, %c0_16] : memref<256x128xf32, #tpu.memory_space<vmem>>, vector<256x128xf32>
    tpu.vector_store %arg6[%c0_15, %c0_16], %22 {strides = array<i32>} : memref<256x128xf32, #tpu.memory_space<vmem>>, vector<256x128xf32>,
    return
  }
  func.func @transform_0(%arg0: i32) -> (i32, i32) {
    %c0_i32 = arith.constant 0 : i32
    %c0_i32_0 = arith.constant 0 : i32
    return %arg0, %c0_i32 : i32, i32
  }
  func.func @transform_1(%arg0: i32) -> (i32, i32) {
    %c0_i32 = arith.constant 0 : i32
    %c0_i32_0 = arith.constant 0 : i32
    %c0_i32_1 = arith.constant 0 : i32
    return %c0_i32, %c0_i32_0 : i32, i32
  }
  func.func @transform_2(%arg0: i32) -> (i32, i32) {
    %c0_i32 = arith.constant 0 : i32
    %c0_i32_0 = arith.constant 0 : i32
    %c0_i32_1 = arith.constant 0 : i32
    return %c0_i32, %c0_i32_0 : i32, i32
  }
  func.func @transform_3(%arg0: i32) -> (i32, i32) {
    %c0_i32 = arith.constant 0 : i32
    %c0_i32_0 = arith.constant 0 : i32
    %c0_i32_1 = arith.constant 0 : i32
    return %c0_i32, %c0_i32_0 : i32, i32
  }
  func.func @transform_4(%arg0: i32) -> (i32, i32) {
    %c0_i32 = arith.constant 0 : i32
    %c0_i32_0 = arith.constant 0 : i32
    %c0_i32_1 = arith.constant 0 : i32
    return %c0_i32, %c0_i32_0 : i32, i32
  }
  func.func @transform_5(%arg0: i32) -> (i32, i32) {
    %c0_i32 = arith.constant 0 : i32
    %c0_i32_0 = arith.constant 0 : i32
    return %arg0, %c0_i32 : i32, i32
  }
}

</mosaic_0001>

<llo_original>
// kernel: mc_init_embedding.1
$region0: #{mc_init_embedding.1}
  #allocation0 [shape = 'u32[]', space=smem, size = 0x4, offset = 0x4, fixed_abs, tag = 'smem constant byte address 0x4 - core index']
  #allocation1 [shape = 'u32[144,128]{1,0:T(1,128)}', space=vmem, size = 0x12000, scoped, tag = 'internal scratch']
  %s0 = inlined_call_operand.vmem [shape: f32[1024,500], index: 0, kind: input, shape index: {}]
  %s1 = inlined_call_operand.vmem [shape: bf16[500,128], index: 1, kind: input, shape index: {}]
  %s2 = inlined_call_operand.vmem [shape: f32[3,128], index: 2, kind: input, shape index: {}]
  %s3 = inlined_call_operand.vmem [shape: bf16[128,128], index: 3, kind: input, shape index: {}]
  %s4 = inlined_call_operand.vmem [shape: bf16[128,128], index: 4, kind: input, shape index: {}]
  %s5 = inlined_call_operand.vmem [shape: f32[1024,128], index: 5, kind: output, shape index: {}]
  %s6 = sld [smem:[#allocation0]]
  $region53: #{mc_init_embedding.1} parent=0
    _
  %s8 = ssub.s32 1, %s6
  %s9 = scalar_select 0, %s8, %s6
  loop: start=0, step=1, limit=6
  $region2: #{mc_init_embedding.1} parent=0 // loop_pre_header
    _
  $region3: #{mc_init_embedding.1} parent=0 // loop_header
    %s11 = sphi 0, %s15
    %p12 = scmp.ge.s32.totalorder %s11, 6
    %s21 = sphi 0, %s23
    %s24 = sphi 0, %s21
    %s25 = sphi 0, %s24
    %s41 = sphi 0, %s25
    %s45 = sphi 0, %s45
    %s47 = sphi 0, %s45
    %s48 = sphi 0, %s47
    %s62 = sphi 0, %s48
    %s66 = sphi 0, %s66
    %s68 = sphi 0, %s66
    %s69 = sphi 0, %s68
    %s83 = sphi 0, %s69
    %s87 = sphi 0, %s87
    %s89 = sphi 0, %s87
    %s90 = sphi 0, %s89
    %s104 = sphi 0, %s90
    %s108 = sphi 0, %s108
    %s110 = sphi 0, %s108
    %s111 = sphi 0, %s110
    %s125 = sphi 0, %s111
    %s131 = sphi 0, %s133
    %s134 = sphi 0, %s131
    %s135 = sphi 0, %s134
    %s151 = sphi 0, %s135
  $region4: #{mc_init_embedding.1} parent=0 // loop_header_branch
    %14 = sbr.rel (%p12) target = $region8
  $region5: #{mc_init_embedding.1} parent=0 // loop_body
    %s16 = ssub.s32 %s11, 1
    %s17 = ssub.s32 %s11, 2
    %s18 = sadd.s32 %s11, 1
    %s19 = ssub.s32 %s11, %s18
    %p20 = scmp.eq.s32.totalorder %s19, 0
    %s22 = sadd.s32 %s21, 1
    %s23 = scalar_select %p20, %s21, %s22
    %p26 = pneg %p20
    %p27 = scmp.eq.s32.totalorder %s11, 3
    %p28 = por %p26, %p27
    %p29 = scmp.ne.s32.totalorder %s21, %s24
    %p30 = scmp.eq.s32.totalorder %s11, 0
    %p31 = por %p29, %p30
    %p32 = scmp.ne.s32.totalorder %s21, %s24
    %p33 = scmp.eq.s32.totalorder %s16, 3
    %p34 = por %p32, %p33
    %p35 = scmp.ne.s32.totalorder %s24, %s25
    %p36 = scmp.eq.s32.totalorder %s16, 0
    %p37 = por %p35, %p36
    %p38 = scmp.ne.s32.totalorder %s24, %s25
    %p39 = scmp.eq.s32.totalorder %s17, 3
    %p40 = por %p38, %p39
    %p42 = scmp.ne.s32.totalorder %s25, %s41
    %p43 = scmp.eq.s32.totalorder %s17, 0
    %p44 = por %p42, %p43
    %s46 = sadd.s32 %s45, 1
    %p49 = scmp.eq.s32.totalorder %s11, 3
    %p50 = scmp.ne.s32.totalorder %s45, %s47
    %p51 = scmp.eq.s32.totalorder %s11, 0
    %p52 = por %p50, %p51
    %p53 = scmp.ne.s32.totalorder %s45, %s47
    %p54 = scmp.eq.s32.totalorder %s16, 3
    %p55 = por %p53, %p54
    %p56 = scmp.ne.s32.totalorder %s47, %s48
    %p57 = scmp.eq.s32.totalorder %s16, 0
    %p58 = por %p56, %p57
    %p59 = scmp.ne.s32.totalorder %s47, %s48
    %p60 = scmp.eq.s32.totalorder %s17, 3
    %p61 = por %p59, %p60
    %p63 = scmp.ne.s32.totalorder %s48, %s62
    %p64 = scmp.eq.s32.totalorder %s17, 0
    %p65 = por %p63, %p64
    %s67 = sadd.s32 %s66, 1
    %p70 = scmp.eq.s32.totalorder %s11, 3
    %p71 = scmp.ne.s32.totalorder %s66, %s68
    %p72 = scmp.eq.s32.totalorder %s11, 0
    %p73 = por %p71, %p72
    %p74 = scmp.ne.s32.totalorder %s66, %s68
    %p75 = scmp.eq.s32.totalorder %s16, 3
    %p76 = por %p74, %p75
    %p77 = scmp.ne.s32.totalorder %s68, %s69
    %p78 = scmp.eq.s32.totalorder %s16, 0
    %p79 = por %p77, %p78
    %p80 = scmp.ne.s32.totalorder %s68, %s69
    %p81 = scmp.eq.s32.totalorder %s17, 3
    %p82 = por %p80, %p81
    %p84 = scmp.ne.s32.totalorder %s69, %s83
    %p85 = scmp.eq.s32.totalorder %s17, 0
    %p86 = por %p84, %p85
    %s88 = sadd.s32 %s87, 1
    %p91 = scmp.eq.s32.totalorder %s11, 3
    %p92 = scmp.ne.s32.totalorder %s87, %s89
    %p93 = scmp.eq.s32.totalorder %s11, 0
    %p94 = por %p92, %p93
    %p95 = scmp.ne.s32.totalorder %s87, %s89
    %p96 = scmp.eq.s32.totalorder %s16, 3
    %p97 = por %p95, %p96
    %p98 = scmp.ne.s32.totalorder %s89, %s90
    %p99 = scmp.eq.s32.totalorder %s16, 0
    %p100 = por %p98, %p99
    %p101 = scmp.ne.s32.totalorder %s89, %s90
    %p102 = scmp.eq.s32.totalorder %s17, 3
    %p103 = por %p101, %p102
    %p105 = scmp.ne.s32.totalorder %s90, %s104
    %p106 = scmp.eq.s32.totalorder %s17, 0
    %p107 = por %p105, %p106
    %s109 = sadd.s32 %s108, 1
    %p112 = scmp.eq.s32.totalorder %s11, 3
    %p113 = scmp.ne.s32.totalorder %s108, %s110
    %p114 = scmp.eq.s32.totalorder %s11, 0
    %p115 = por %p113, %p114
    %p116 = scmp.ne.s32.totalorder %s108, %s110
    %p117 = scmp.eq.s32.totalorder %s16, 3
    %p118 = por %p116, %p117
    %p119 = scmp.ne.s32.totalorder %s110, %s111
    %p120 = scmp.eq.s32.totalorder %s16, 0
    %p121 = por %p119, %p120
    %p122 = scmp.ne.s32.totalorder %s110, %s111
    %p123 = scmp.eq.s32.totalorder %s17, 3
    %p124 = por %p122, %p123
    %p126 = scmp.ne.s32.totalorder %s111, %s125
    %p127 = scmp.eq.s32.totalorder %s17, 0
    %p128 = por %p126, %p127
    %s129 = ssub.s32 %s11, %s18
    %p130 = scmp.eq.s32.totalorder %s129, 0
    %s132 = sadd.s32 %s131, 1
    %s133 = scalar_select %p130, %s131, %s132
    %p136 = pneg %p130
    %p137 = scmp.eq.s32.totalorder %s11, 3
    %p138 = por %p136, %p137
    %p139 = scmp.ne.s32.totalorder %s131, %s134
    %p140 = scmp.eq.s32.totalorder %s11, 0
    %p141 = por %p139, %p140
    %p142 = scmp.ne.s32.totalorder %s131, %s134
    %p143 = scmp.eq.s32.totalorder %s16, 3
    %p144 = por %p142, %p143
    %p145 = scmp.ne.s32.totalorder %s134, %s135
    %p146 = scmp.eq.s32.totalorder %s16, 0
    %p147 = por %p145, %p146
    %p148 = scmp.ne.s32.totalorder %s134, %s135
    %p149 = scmp.eq.s32.totalorder %s17, 3
    %p150 = por %p148, %p149
    %p152 = scmp.ne.s32.totalorder %s135, %s151
    %p153 = scmp.eq.s32.totalorder %s17, 0
    %p154 = por %p152, %p153
    %p155 = scmp.le.s32.totalorder 1, %s11
    %p156 = scmp.lt.s32.totalorder %s11, 5
    %p157 = pnand %p155, %p156
    %p158 = pneg %p157
    // Predicated region
    $region9: #{mc_init_embedding.1} parent=5 // pred_check
      _
    $region10: #{mc_init_embedding.1} parent=5 // pred_check_branch
      %160 = sbr.rel (%p157) target = $region12
    $region11: #{mc_init_embedding.1} parent=5 // pred_region
      %s161 = ssub.s32 %s11, 1
      // Predicated region
      $region13: #{mc_init_embedding.1} parent=11 // pred_check
        %p162 = pneg %p58
      $region14: #{mc_init_embedding.1} parent=11 // pred_check_branch
        %164 = sbr.rel (%p162) target = $region16
      $region15: #{mc_init_embedding.1} parent=11 // pred_region
        _
      $region16: #{mc_init_embedding.1} parent=11 // pred_fallthru
        _
      // Predicated region
      $region17: #{mc_init_embedding.1} parent=11 // pred_check
        %p165 = pneg %p79
      $region18: #{mc_init_embedding.1} parent=11 // pred_check_branch
        %167 = sbr.rel (%p165) target = $region20
      $region19: #{mc_init_embedding.1} parent=11 // pred_region
        _
      $region20: #{mc_init_embedding.1} parent=11 // pred_fallthru
        _
      // Predicated region
      $region21: #{mc_init_embedding.1} parent=11 // pred_check
        %p168 = pneg %p100
      $region22: #{mc_init_embedding.1} parent=11 // pred_check_branch
        %170 = sbr.rel (%p168) target = $region24
      $region23: #{mc_init_embedding.1} parent=11 // pred_region
        _
      $region24: #{mc_init_embedding.1} parent=11 // pred_fallthru
        _
      // Predicated region
      $region25: #{mc_init_embedding.1} parent=11 // pred_check
        %p171 = pneg %p121
      $region26: #{mc_init_embedding.1} parent=11 // pred_check_branch
        %173 = sbr.rel (%p171) target = $region28
      $region27: #{mc_init_embedding.1} parent=11 // pred_region
        _
      $region28: #{mc_init_embedding.1} parent=11 // pred_fallthru
        _
    $region12: #{mc_init_embedding.1} parent=5 // pred_fallthru
      _
    %p174 = scmp.lt.s32.totalorder %s11, 4
    // Predicated region
    $region29: #{mc_init_embedding.1} parent=5 // pred_check
      %p175 = pneg %p174
    $region30: #{mc_init_embedding.1} parent=5 // pred_check_branch
      %177 = sbr.rel (%p175) target = $region32
    $region31: #{mc_init_embedding.1} parent=5 // pred_region
      // Predicated region
      $region33: #{mc_init_embedding.1} parent=31 // pred_check
        %p178 = pneg %p31
      $region34: #{mc_init_embedding.1} parent=31 // pred_check_branch
        %180 = sbr.rel (%p178) target = $region36
      $region35: #{mc_init_embedding.1} parent=31 // pred_region
        %s181 = smul.u32 32, %s11
        %p182 = scmp.lt.s32.totalorder %s181, 127
        %s183 = scalar_select %p182, %s181, 127
        %s184 = smul.addr %s183, 4
        %s185 = smul.addr %s184, 8
        %s186 = scalar_lea.vmem %s0, %s185
        %s187 = smul.u32 32, %s11
      $region36: #{mc_init_embedding.1} parent=31 // pred_fallthru
        _
    $region32: #{mc_init_embedding.1} parent=5 // pred_fallthru
      _
    %p188 = scmp.le.s32.totalorder 1, %s11
    %p189 = scmp.lt.s32.totalorder %s11, 5
    %p190 = pnand %p188, %p189
    %p191 = pneg %p190
    // Predicated region
    $region37: #{mc_init_embedding.1} parent=5 // pred_check
      _
    $region38: #{mc_init_embedding.1} parent=5 // pred_check_branch
      %193 = sbr.rel (%p190) target = $region40
    $region39: #{mc_init_embedding.1} parent=5 // pred_region
      %s194 = ssub.s32 %s11, 1
      %s195 = smul.u32 32, %s16
      %p196 = scmp.lt.s32.totalorder %s195, 127
      %s197 = scalar_select %p196, %s195, 127
      %s198 = smul.addr %s197, 4
      %s199 = smul.addr %s198, 8
      %s200 = scalar_lea.vmem %s0, %s199
      %p201 = pneg %p37
      %p202 = pneg %p34
      %p203 = pneg %p58
      %p204 = pneg %p55
      %p205 = pneg %p79
      %p206 = pneg %p76
      %p207 = pneg %p100
      %p208 = pneg %p97
      %p209 = pneg %p121
      %p210 = pneg %p118
      %p211 = pneg %p147
      %p212 = pneg %p144
      %s213 = smul.u32 32, %s16
      %p214 = scmp.lt.s32.totalorder %s213, 127
      %s215 = scalar_select %p214, %s213, 127
      %s216 = smul.addr %s215, 8
      %s217 = scalar_lea.vmem %s5, %s216
      %s218 = smul.u32 32, %s16
      %p219 = scmp.lt.s32.totalorder %s218, 127
      %s220 = scalar_select %p219, %s218, 127
      %s221 = smul.addr %s220, 4
      %s222 = smul.addr %s221, 8
      %s223 = scalar_lea.vmem %s0, %s222
      %s224 = smul.u32 32, %s16
      %s225 = smul.u32 32, %s16
      %p226 = scmp.lt.s32.totalorder %s225, 127
      %s227 = scalar_select %p226, %s225, 127
      %s228 = smul.addr %s227, 8
      %s229 = scalar_lea.vmem %s5, %s228
      %s230 = smul.u32 32, %s16
      %v232 = vld [vmem:[%s223] sm:$0xff]
      %v233 = vld [vmem:[%s223 + $0x8] sm:$0xff]
      %v234 = vld [vmem:[%s223 + $0x10] sm:$0xff]
      %v235 = vld [vmem:[%s223 + $0x18] sm:$0xff]
      %v236 = vld [vmem:[%s223 + $0x20] sm:$0xff]
      %v237 = vld [vmem:[%s223 + $0x28] sm:$0xff]
      %v238 = vld [vmem:[%s223 + $0x30] sm:$0xff]
      %v239 = vld [vmem:[%s223 + $0x38] sm:$0xff]
      %v240 = vld [vmem:[%s223 + $0x40] sm:$0xff]
      %v241 = vld [vmem:[%s223 + $0x48] sm:$0xff]
      %v242 = vld [vmem:[%s223 + $0x50] sm:$0xff]
      %v243 = vld [vmem:[%s223 + $0x58] sm:$0xff]
      %v244 = vld [vmem:[%s223 + $0x60] sm:$0xff]
      %v245 = vld [vmem:[%s223 + $0x68] sm:$0xff]
      %v246 = vld [vmem:[%s223 + $0x70] sm:$0xff]
      %v247 = vld [vmem:[%s223 + $0x78] sm:$0xff]
      %v248 = vld [vmem:[%s223 + $0x80] sm:$0xff]
      %v249 = vld [vmem:[%s223 + $0x88] sm:$0xff]
      %v250 = vld [vmem:[%s223 + $0x90] sm:$0xff]
      %v251 = vld [vmem:[%s223 + $0x98] sm:$0xff]
      %v252 = vld [vmem:[%s223 + $0xa0] sm:$0xff]
      %v253 = vld [vmem:[%s223 + $0xa8] sm:$0xff]
      %v254 = vld [vmem:[%s223 + $0xb0] sm:$0xff]
      %v255 = vld [vmem:[%s223 + $0xb8] sm:$0xff]
      %v256 = vld [vmem:[%s223 + $0xc0] sm:$0xff]
      %v257 = vld [vmem:[%s223 + $0xc8] sm:$0xff]
      %v258 = vld [vmem:[%s223 + $0xd0] sm:$0xff]
      %v259 = vld [vmem:[%s223 + $0xd8] sm:$0xff]
      %v260 = vld [vmem:[%s223 + $0xe0] sm:$0xff]
      %v261 = vld [vmem:[%s223 + $0xe8] sm:$0xff]
      %v262 = vld [vmem:[%s223 + $0xf0] sm:$0xff]
      %v263 = vld [vmem:[%s223 + $0xf8] sm:$0xff]
      %v264 = vld [vmem:[%s223 + $0x100] sm:$0xff]
      %v265 = vld [vmem:[%s223 + $0x108] sm:$0xff]
      %v266 = vld [vmem:[%s223 + $0x110] sm:$0xff]
      %v267 = vld [vmem:[%s223 + $0x118] sm:$0xff]
      %v268 = vld [vmem:[%s223 + $0x120] sm:$0xff]
      %v269 = vld [vmem:[%s223 + $0x128] sm:$0xff]
      %v270 = vld [vmem:[%s223 + $0x130] sm:$0xff]
      %v271 = vld [vmem:[%s223 + $0x138] sm:$0xff]
      %v272 = vld [vmem:[%s223 + $0x140] sm:$0xff]
      %v273 = vld [vmem:[%s223 + $0x148] sm:$0xff]
      %v274 = vld [vmem:[%s223 + $0x150] sm:$0xff]
      %v275 = vld [vmem:[%s223 + $0x158] sm:$0xff]
      %v276 = vld [vmem:[%s223 + $0x160] sm:$0xff]
      %v277 = vld [vmem:[%s223 + $0x168] sm:$0xff]
      %v278 = vld [vmem:[%s223 + $0x170] sm:$0xff]
      %v279 = vld [vmem:[%s223 + $0x178] sm:$0xff]
      %v280 = vld [vmem:[%s223 + $0x180] sm:$0xff]
      %v281 = vld [vmem:[%s223 + $0x188] sm:$0xff]
      %v282 = vld [vmem:[%s223 + $0x190] sm:$0xff]
      %v283 = vld [vmem:[%s223 + $0x198] sm:$0xff]
      %v284 = vld [vmem:[%s223 + $0x1a0] sm:$0xff]
      %v285 = vld [vmem:[%s223 + $0x1a8] sm:$0xff]
      %v286 = vld [vmem:[%s223 + $0x1b0] sm:$0xff]
      %v287 = vld [vmem:[%s223 + $0x1b8] sm:$0xff]
      %v288 = vld [vmem:[%s223 + $0x1c0] sm:$0xff]
      %v289 = vld [vmem:[%s223 + $0x1c8] sm:$0xff]
      %v290 = vld [vmem:[%s223 + $0x1d0] sm:$0xff]
      %v291 = vld [vmem:[%s223 + $0x1d8] sm:$0xff]
      %v292 = vld [vmem:[%s223 + $0x1e0] sm:$0xff]
      %v293 = vld [vmem:[%s223 + $0x1e8] sm:$0xff]
      %v294 = vld [vmem:[%s223 + $0x1f0] sm:$0xff]
      %v295 = vld [vmem:[%s223 + $0x1f8] sm:$0xff]
      %v296 = vld [vmem:[%s223 + $0x200] sm:$0xff]
      %v297 = vld [vmem:[%s223 + $0x208] sm:$0xff]
      %v298 = vld [vmem:[%s223 + $0x210] sm:$0xff]
      %v299 = vld [vmem:[%s223 + $0x218] sm:$0xff]
      %v300 = vld [vmem:[%s223 + $0x220] sm:$0xff]
      %v301 = vld [vmem:[%s223 + $0x228] sm:$0xff]
      %v302 = vld [vmem:[%s223 + $0x230] sm:$0xff]
      %v303 = vld [vmem:[%s223 + $0x238] sm:$0xff]
      %v304 = vld [vmem:[%s223 + $0x240] sm:$0xff]
      %v305 = vld [vmem:[%s223 + $0x248] sm:$0xff]
      %v306 = vld [vmem:[%s223 + $0x250] sm:$0xff]
      %v307 = vld [vmem:[%s223 + $0x258] sm:$0xff]
      %v308 = vld [vmem:[%s223 + $0x260] sm:$0xff]
      %v309 = vld [vmem:[%s223 + $0x268] sm:$0xff]
      %v310 = vld [vmem:[%s223 + $0x270] sm:$0xff]
      %v311 = vld [vmem:[%s223 + $0x278] sm:$0xff]
      %v312 = vld [vmem:[%s223 + $0x280] sm:$0xff]
      %v313 = vld [vmem:[%s223 + $0x288] sm:$0xff]
      %v314 = vld [vmem:[%s223 + $0x290] sm:$0xff]
      %v315 = vld [vmem:[%s223 + $0x298] sm:$0xff]
      %v316 = vld [vmem:[%s223 + $0x2a0] sm:$0xff]
      %v317 = vld [vmem:[%s223 + $0x2a8] sm:$0xff]
      %v318 = vld [vmem:[%s223 + $0x2b0] sm:$0xff]
      %v319 = vld [vmem:[%s223 + $0x2b8] sm:$0xff]
      %v320 = vld [vmem:[%s223 + $0x2c0] sm:$0xff]
      %v321 = vld [vmem:[%s223 + $0x2c8] sm:$0xff]
      %v322 = vld [vmem:[%s223 + $0x2d0] sm:$0xff]
      %v323 = vld [vmem:[%s223 + $0x2d8] sm:$0xff]
      %v324 = vld [vmem:[%s223 + $0x2e0] sm:$0xff]
      %v325 = vld [vmem:[%s223 + $0x2e8] sm:$0xff]
      %v326 = vld [vmem:[%s223 + $0x2f0] sm:$0xff]
      %v327 = vld [vmem:[%s223 + $0x2f8] sm:$0xff]
      %v328 = vld [vmem:[%s223 + $0x300] sm:$0xff]
      %v329 = vld [vmem:[%s223 + $0x308] sm:$0xff]
      %v330 = vld [vmem:[%s223 + $0x310] sm:$0xff]
      %v331 = vld [vmem:[%s223 + $0x318] sm:$0xff]
      %v332 = vld [vmem:[%s223 + $0x320] sm:$0xff]
      %v333 = vld [vmem:[%s223 + $0x328] sm:$0xff]
      %v334 = vld [vmem:[%s223 + $0x330] sm:$0xff]
      %v335 = vld [vmem:[%s223 + $0x338] sm:$0xff]
      %v336 = vld [vmem:[%s223 + $0x340] sm:$0xff]
      %v337 = vld [vmem:[%s223 + $0x348] sm:$0xff]
      %v338 = vld [vmem:[%s223 + $0x350] sm:$0xff]
      %v339 = vld [vmem:[%s223 + $0x358] sm:$0xff]
      %v340 = vld [vmem:[%s223 + $0x360] sm:$0xff]
      %v341 = vld [vmem:[%s223 + $0x368] sm:$0xff]
      %v342 = vld [vmem:[%s223 + $0x370] sm:$0xff]
      %v343 = vld [vmem:[%s223 + $0x378] sm:$0xff]
      %v344 = vld [vmem:[%s223 + $0x380] sm:$0xff]
      %v345 = vld [vmem:[%s223 + $0x388] sm:$0xff]
      %v346 = vld [vmem:[%s223 + $0x390] sm:$0xff]
      %v347 = vld [vmem:[%s223 + $0x398] sm:$0xff]
      %v348 = vld [vmem:[%s223 + $0x3a0] sm:$0xff]
      %v349 = vld [vmem:[%s223 + $0x3a8] sm:$0xff]
      %v350 = vld [vmem:[%s223 + $0x3b0] sm:$0xff]
      %v351 = vld [vmem:[%s223 + $0x3b8] sm:$0xff]
      %v352 = vld [vmem:[%s223 + $0x3c0] sm:$0xff]
      %v353 = vld [vmem:[%s223 + $0x3c8] sm:$0xff]
      %v354 = vld [vmem:[%s223 + $0x3d0] sm:$0xff]
      %v355 = vld [vmem:[%s223 + $0x3d8] sm:$0xff]
      %v356 = vld [vmem:[%s223 + $0x3e0] sm:$0xff]
      %v357 = vld [vmem:[%s223 + $0x3e8] sm:$0xff]
      %v358 = vld [vmem:[%s223 + $0x3f0] sm:$0xff]
      %v359 = vld [vmem:[%s223 + $0x3f8] sm:$0xff]
      %v360 = vpack.c.bf16 %v236, %v232
      %v361 = vpack.c.bf16 %v237, %v233
      %v362 = vpack.c.bf16 %v238, %v234
      %v363 = vpack.c.bf16 %v239, %v235
      %v364 = vpack.c.bf16 %v244, %v240
      %v365 = vpack.c.bf16 %v245, %v241
      %v366 = vpack.c.bf16 %v246, %v242
      %v367 = vpack.c.bf16 %v247, %v243
      %v368 = vpack.c.bf16 %v252, %v248
      %v369 = vpack.c.bf16 %v253, %v249
      %v370 = vpack.c.bf16 %v254, %v250
      %v371 = vpack.c.bf16 %v255, %v251
      %v372 = vpack.c.bf16 %v260, %v256
      %v373 = vpack.c.bf16 %v261, %v257
      %v374 = vpack.c.bf16 %v262, %v258
      %v375 = vpack.c.bf16 %v263, %v259
      %v376 = vpack.c.bf16 %v268, %v264
      %v377 = vpack.c.bf16 %v269, %v265
      %v378 = vpack.c.bf16 %v270, %v266
      %v379 = vpack.c.bf16 %v271, %v267
      %v380 = vpack.c.bf16 %v276, %v272
      %v381 = vpack.c.bf16 %v277, %v273
      %v382 = vpack.c.bf16 %v278, %v274
      %v383 = vpack.c.bf16 %v279, %v275
      %v384 = vpack.c.bf16 %v284, %v280
      %v385 = vpack.c.bf16 %v285, %v281
      %v386 = vpack.c.bf16 %v286, %v282
      %v387 = vpack.c.bf16 %v287, %v283
      %v388 = vpack.c.bf16 %v292, %v288
      %v389 = vpack.c.bf16 %v293, %v289
      %v390 = vpack.c.bf16 %v294, %v290
      %v391 = vpack.c.bf16 %v295, %v291
      %v392 = vpack.c.bf16 %v300, %v296
      %v393 = vpack.c.bf16 %v301, %v297
      %v394 = vpack.c.bf16 %v302, %v298
      %v395 = vpack.c.bf16 %v303, %v299
      %v396 = vpack.c.bf16 %v308, %v304
      %v397 = vpack.c.bf16 %v309, %v305
      %v398 = vpack.c.bf16 %v310, %v306
      %v399 = vpack.c.bf16 %v311, %v307
      %v400 = vpack.c.bf16 %v316, %v312
      %v401 = vpack.c.bf16 %v317, %v313
      %v402 = vpack.c.bf16 %v318, %v314
      %v403 = vpack.c.bf16 %v319, %v315
      %v404 = vpack.c.bf16 %v324, %v320
      %v405 = vpack.c.bf16 %v325, %v321
      %v406 = vpack.c.bf16 %v326, %v322
      %v407 = vpack.c.bf16 %v327, %v323
      %v408 = vpack.c.bf16 %v332, %v328
      %v409 = vpack.c.bf16 %v333, %v329
      %v410 = vpack.c.bf16 %v334, %v330
      %v411 = vpack.c.bf16 %v335, %v331
      %v412 = vpack.c.bf16 %v340, %v336
      %v413 = vpack.c.bf16 %v341, %v337
      %v414 = vpack.c.bf16 %v342, %v338
      %v415 = vpack.c.bf16 %v343, %v339
      %v416 = vpack.c.bf16 %v348, %v344
      %v417 = vpack.c.bf16 %v349, %v345
      %v418 = vpack.c.bf16 %v350, %v346
      %v419 = vpack.c.bf16 %v351, %v347
      %v420 = vpack.c.bf16 %v356, %v352
      %v421 = vpack.c.bf16 %v357, %v353
      %v422 = vpack.c.bf16 %v358, %v354
      %v423 = vpack.c.bf16 %v359, %v355
      %v424 = vld [vmem:[%s1] sm:$0xf]
      %v425 = vld [vmem:[%s1 + $0x4] sm:$0xf]
      %v426 = vld [vmem:[%s1 + $0x8] sm:$0xf]
      %v427 = vld [vmem:[%s1 + $0xc] sm:$0xf]
      %v428 = vld [vmem:[%s1 + $0x10] sm:$0xf]
      %v429 = vld [vmem:[%s1 + $0x14] sm:$0xf]
      %v430 = vld [vmem:[%s1 + $0x18] sm:$0xf]
      %v431 = vld [vmem:[%s1 + $0x1c] sm:$0xf]
      %v432 = vld [vmem:[%s1 + $0x20] sm:$0xf]
      %v433 = vld [vmem:[%s1 + $0x24] sm:$0xf]
      %v434 = vld [vmem:[%s1 + $0x28] sm:$0xf]
      %v435 = vld [vmem:[%s1 + $0x2c] sm:$0xf]
      %v436 = vld [vmem:[%s1 + $0x30] sm:$0xf]
      %v437 = vld [vmem:[%s1 + $0x34] sm:$0xf]
      %v438 = vld [vmem:[%s1 + $0x38] sm:$0xf]
      %v439 = vld [vmem:[%s1 + $0x3c] sm:$0xf]
      %v440 = vld [vmem:[%s1 + $0x40] sm:$0xf]
      %v441 = vld [vmem:[%s1 + $0x44] sm:$0xf]
      %v442 = vld [vmem:[%s1 + $0x48] sm:$0xf]
      %v443 = vld [vmem:[%s1 + $0x4c] sm:$0xf]
      %v444 = vld [vmem:[%s1 + $0x50] sm:$0xf]
      %v445 = vld [vmem:[%s1 + $0x54] sm:$0xf]
      %v446 = vld [vmem:[%s1 + $0x58] sm:$0xf]
      %v447 = vld [vmem:[%s1 + $0x5c] sm:$0xf]
      %v448 = vld [vmem:[%s1 + $0x60] sm:$0xf]
      %v449 = vld [vmem:[%s1 + $0x64] sm:$0xf]
      %v450 = vld [vmem:[%s1 + $0x68] sm:$0xf]
      %v451 = vld [vmem:[%s1 + $0x6c] sm:$0xf]
      %v452 = vld [vmem:[%s1 + $0x70] sm:$0xf]
      %v453 = vld [vmem:[%s1 + $0x74] sm:$0xf]
      %v454 = vld [vmem:[%s1 + $0x78] sm:$0xf]
      %v455 = vld [vmem:[%s1 + $0x7c] sm:$0xf]
      %v456 = vld [vmem:[%s1 + $0x80] sm:$0xf]
      %v457 = vld [vmem:[%s1 + $0x84] sm:$0xf]
      %v458 = vld [vmem:[%s1 + $0x88] sm:$0xf]
      %v459 = vld [vmem:[%s1 + $0x8c] sm:$0xf]
      %v460 = vld [vmem:[%s1 + $0x90] sm:$0xf]
      %v461 = vld [vmem:[%s1 + $0x94] sm:$0xf]
      %v462 = vld [vmem:[%s1 + $0x98] sm:$0xf]
      %v463 = vld [vmem:[%s1 + $0x9c] sm:$0xf]
      %v464 = vld [vmem:[%s1 + $0xa0] sm:$0xf]
      %v465 = vld [vmem:[%s1 + $0xa4] sm:$0xf]
      %v466 = vld [vmem:[%s1 + $0xa8] sm:$0xf]
      %v467 = vld [vmem:[%s1 + $0xac] sm:$0xf]
      %v468 = vld [vmem:[%s1 + $0xb0] sm:$0xf]
      %v469 = vld [vmem:[%s1 + $0xb4] sm:$0xf]
      %v470 = vld [vmem:[%s1 + $0xb8] sm:$0xf]
      %v471 = vld [vmem:[%s1 + $0xbc] sm:$0xf]
      %v472 = vld [vmem:[%s1 + $0xc0] sm:$0xf]
      %v473 = vld [vmem:[%s1 + $0xc4] sm:$0xf]
      %v474 = vld [vmem:[%s1 + $0xc8] sm:$0xf]
      %v475 = vld [vmem:[%s1 + $0xcc] sm:$0xf]
      %v476 = vld [vmem:[%s1 + $0xd0] sm:$0xf]
      %v477 = vld [vmem:[%s1 + $0xd4] sm:$0xf]
      %v478 = vld [vmem:[%s1 + $0xd8] sm:$0xf]
      %v479 = vld [vmem:[%s1 + $0xdc] sm:$0xf]
      %v480 = vld [vmem:[%s1 + $0xe0] sm:$0xf]
      %v481 = vld [vmem:[%s1 + $0xe4] sm:$0xf]
      %v482 = vld [vmem:[%s1 + $0xe8] sm:$0xf]
      %v483 = vld [vmem:[%s1 + $0xec] sm:$0xf]
      %v484 = vld [vmem:[%s1 + $0xf0] sm:$0xf]
      %v485 = vld [vmem:[%s1 + $0xf4] sm:$0xf]
      %v486 = vld [vmem:[%s1 + $0xf8] sm:$0x3]
      %v487 = vld [vmem:[%s2] sm:$0x1]
      %v488 = vlaneseq
      %v489 = vshrl.u32 %v488, 7
      %v490 = vsub.s32 0, %v489
      %v491 = vrot.slane %v487, %v490
      %v555 = vunpack.c.l.b16 %v424
      %v556 = vunpack.c.l.b16 %v425
      %v557 = vunpack.c.l.b16 %v426
      %v558 = vunpack.c.l.b16 %v427
      %v559 = vunpack.c.l.b16 %v428
      %v560 = vunpack.c.l.b16 %v429
      %v561 = vunpack.c.l.b16 %v430
      %v562 = vunpack.c.l.b16 %v431
      %v563 = vunpack.c.l.b16 %v432
      %v564 = vunpack.c.l.b16 %v433
      %v565 = vunpack.c.l.b16 %v434
      %v566 = vunpack.c.l.b16 %v435
      %v567 = vunpack.c.l.b16 %v436
      %v568 = vunpack.c.l.b16 %v437
      %v569 = vunpack.c.l.b16 %v438
      %v570 = vunpack.c.l.b16 %v439
      %v571 = vunpack.c.l.b16 %v440
      %v572 = vunpack.c.l.b16 %v441
      %v573 = vunpack.c.l.b16 %v442
      %v574 = vunpack.c.l.b16 %v443
      %v575 = vunpack.c.l.b16 %v444
      %v576 = vunpack.c.l.b16 %v445
      %v577 = vunpack.c.l.b16 %v446
      %v578 = vunpack.c.l.b16 %v447
      %v579 = vunpack.c.l.b16 %v448
      %v580 = vunpack.c.l.b16 %v449
      %v581 = vunpack.c.l.b16 %v450
      %v582 = vunpack.c.l.b16 %v451
      %v583 = vunpack.c.l.b16 %v452
      %v584 = vunpack.c.l.b16 %v453
      %v585 = vunpack.c.l.b16 %v454
      %v586 = vunpack.c.l.b16 %v455
      %v587 = vunpack.c.l.b16 %v456
      %v588 = vunpack.c.l.b16 %v457
      %v589 = vunpack.c.l.b16 %v458
      %v590 = vunpack.c.l.b16 %v459
      %v591 = vunpack.c.l.b16 %v460
      %v592 = vunpack.c.l.b16 %v461
      %v593 = vunpack.c.l.b16 %v462
      %v594 = vunpack.c.l.b16 %v463
      %v595 = vunpack.c.l.b16 %v464
      %v596 = vunpack.c.l.b16 %v465
      %v597 = vunpack.c.l.b16 %v466
      %v598 = vunpack.c.l.b16 %v467
      %v599 = vunpack.c.l.b16 %v468
      %v600 = vunpack.c.l.b16 %v469
      %v601 = vunpack.c.l.b16 %v470
      %v602 = vunpack.c.l.b16 %v471
      %v603 = vunpack.c.l.b16 %v472
      %v604 = vunpack.c.l.b16 %v473
      %v605 = vunpack.c.l.b16 %v474
      %v606 = vunpack.c.l.b16 %v475
      %v607 = vunpack.c.l.b16 %v476
      %v608 = vunpack.c.l.b16 %v477
      %v609 = vunpack.c.l.b16 %v478
      %v610 = vunpack.c.l.b16 %v479
      %v611 = vunpack.c.l.b16 %v480
      %v612 = vunpack.c.l.b16 %v481
      %v613 = vunpack.c.l.b16 %v482
      %v614 = vunpack.c.l.b16 %v483
      %v615 = vunpack.c.l.b16 %v484
      %v616 = vunpack.c.l.b16 %v485
      %v617 = vunpack.c.l.b16 %v486
      %v618 = vpack.c.b16 %v556, %v555
      %v619 = vpack.c.b16 %v558, %v557
      %v620 = vpack.c.b16 %v560, %v559
      %v621 = vpack.c.b16 %v562, %v561
      %v622 = vpack.c.b16 %v564, %v563
      %v623 = vpack.c.b16 %v566, %v565
      %v624 = vpack.c.b16 %v568, %v567
      %v625 = vpack.c.b16 %v570, %v569
      %v626 = vpack.c.b16 %v572, %v571
      %v627 = vpack.c.b16 %v574, %v573
      %v628 = vpack.c.b16 %v576, %v575
      %v629 = vpack.c.b16 %v578, %v577
      %v630 = vpack.c.b16 %v580, %v579
      %v631 = vpack.c.b16 %v582, %v581
      %v632 = vpack.c.b16 %v584, %v583
      %v633 = vpack.c.b16 %v586, %v585
      %v634 = vpack.c.b16 %v588, %v587
      %v635 = vpack.c.b16 %v590, %v589
      %v636 = vpack.c.b16 %v592, %v591
      %v637 = vpack.c.b16 %v594, %v593
      %v638 = vpack.c.b16 %v596, %v595
      %v639 = vpack.c.b16 %v598, %v597
      %v640 = vpack.c.b16 %v600, %v599
      %v641 = vpack.c.b16 %v602, %v601
      %v642 = vpack.c.b16 %v604, %v603
      %v643 = vpack.c.b16 %v606, %v605
      %v644 = vpack.c.b16 %v608, %v607
      %v645 = vpack.c.b16 %v610, %v609
      %v646 = vpack.c.b16 %v612, %v611
      %v647 = vpack.c.b16 %v614, %v613
      %v648 = vpack.c.b16 %v616, %v615
      %v649 = vpack.c.b16 %v617, %v617
      %vm681 = vcmask 949248
      %v683 = vsel %vm681, %v363, 0
      %v686 = vsel %vm681, %v367, 0
      %v689 = vsel %vm681, %v371, 0
      %v692 = vsel %vm681, %v375, 0
      %v695 = vsel %vm681, %v379, 0
      %v698 = vsel %vm681, %v383, 0
      %v701 = vsel %vm681, %v387, 0
      %v704 = vsel %vm681, %v391, 0
      %v707 = vsel %vm681, %v395, 0
      %v710 = vsel %vm681, %v399, 0
      %v713 = vsel %vm681, %v403, 0
      %v716 = vsel %vm681, %v407, 0
      %v719 = vsel %vm681, %v411, 0
      %v722 = vsel %vm681, %v415, 0
      %v725 = vsel %vm681, %v419, 0
      %v728 = vsel %vm681, %v423, 0
      %vm730 = vcmask 1041408
      %v732 = vsel %vm730, %v649, 0
      %734 = vmatprep.subr.bf16.mxu0 0
      %735 = vmatpush1.bf16.msra.mxu0 %v618
      %736 = vmatprep.subr.bf16.mxu0 0
      %737 = vmatpush1.bf16.msra.mxu0 %v619
      %738 = vmatprep.subr.bf16.mxu0 0
      %739 = vmatpush1.bf16.msra.mxu0 %v620
      %740 = vmatprep.subr.bf16.mxu0 0
      %741 = vmatpush1.bf16.msra.mxu0 %v621
      %742 = vmatprep.subr.bf16.mxu0 0
      %743 = vmatpush1.bf16.msra.mxu0 %v622
      %744 = vmatprep.subr.bf16.mxu0 0
      %745 = vmatpush1.bf16.msra.mxu0 %v623
      %746 = vmatprep.subr.bf16.mxu0 0
      %747 = vmatpush1.bf16.msra.mxu0 %v624
      %748 = vmatprep.subr.bf16.mxu0 0
      %749 = vmatpush1.bf16.msra.mxu0 %v625
      %750 = vmatprep.subr.bf16.mxu0 0
      %751 = vmatpush1.bf16.msra.mxu0 %v626
      %752 = vmatprep.subr.bf16.mxu0 0
      %753 = vmatpush1.bf16.msra.mxu0 %v627
      %754 = vmatprep.subr.bf16.mxu0 0
      %755 = vmatpush1.bf16.msra.mxu0 %v628
      %756 = vmatprep.subr.bf16.mxu0 0
      %757 = vmatpush1.bf16.msra.mxu0 %v629
      %758 = vmatprep.subr.bf16.mxu0 0
      %759 = vmatpush1.bf16.msra.mxu0 %v630
      %760 = vmatprep.subr.bf16.mxu0 0
      %761 = vmatpush1.bf16.msra.mxu0 %v631
      %762 = vmatprep.subr.bf16.mxu0 0
      %763 = vmatpush1.bf16.msra.mxu0 %v632
      %764 = vmatprep.subr.bf16.mxu0 0
      %765 = vmatpush1.bf16.msra.mxu0 %v633
      %766 = vmatprep.mubr.bf16.mxu0 %v361
      %767 = vmatmul.mubr.bf16.gmra.mrb[0].mxu0 %v360
      %v768 = vpop.f32.mrb[0].mxu0
      %v769 = vadd.f32 %v491, %v768
      %v770 = vpop.f32.mrb[0].mxu0
      %v771 = vpop.f32.mrb[0].mxu0
      %v772 = vadd.f32 %v491, %v771
      %v773 = vpop.f32.mrb[0].mxu0
      %774 = vmatprep.mubr.bf16.mxu0 %v365
      %775 = vmatmul.mubr.bf16.gmra.mrb[0].mxu0 %v364
      %v776 = vpop.f32.mrb[0].mxu0
      %v777 = vadd.f32 %v491, %v776
      %v778 = vpop.f32.mrb[0].mxu0
      %v779 = vpop.f32.mrb[0].mxu0
      %v780 = vadd.f32 %v491, %v779
      %v781 = vpop.f32.mrb[0].mxu0
      %782 = vmatprep.mubr.bf16.mxu0 %v369
      %783 = vmatmul.mubr.bf16.gmra.mrb[0].mxu0 %v368
      %v784 = vpop.f32.mrb[0].mxu0
      %v785 = vadd.f32 %v491, %v784
      %v786 = vpop.f32.mrb[0].mxu0
      %v787 = vpop.f32.mrb[0].mxu0
      %v788 = vadd.f32 %v491, %v787
      %v789 = vpop.f32.mrb[0].mxu0
      %790 = vmatprep.mubr.bf16.mxu0 %v373
      %791 = vmatmul.mubr.bf16.gmra.mrb[0].mxu0 %v372
      %v792 = vpop.f32.mrb[0].mxu0
      %v793 = vadd.f32 %v491, %v792
      %v794 = vpop.f32.mrb[0].mxu0
      %v795 = vpop.f32.mrb[0].mxu0
      %v796 = vadd.f32 %v491, %v795
      %v797 = vpop.f32.mrb[0].mxu0
      %798 = vmatprep.mubr.bf16.mxu0 %v377
      %799 = vmatmul.mubr.bf16.gmra.mrb[0].mxu0 %v376
      %v800 = vpop.f32.mrb[0].mxu0
      %v801 = vadd.f32 %v491, %v800
      %v802 = vpop.f32.mrb[0].mxu0
      %v803 = vpop.f32.mrb[0].mxu0
      %v804 = vadd.f32 %v491, %v803
      %v805 = vpop.f32.mrb[0].mxu0
      %806 = vmatprep.mubr.bf16.mxu0 %v381
      %807 = vmatmul.mubr.bf16.gmra.mrb[0].mxu0 %v380
      %v808 = vpop.f32.mrb[0].mxu0
      %v809 = vadd.f32 %v491, %v808
      %v810 = vpop.f32.mrb[0].mxu0
      %v811 = vpop.f32.mrb[0].mxu0
      %v812 = vadd.f32 %v491, %v811
      %v813 = vpop.f32.mrb[0].mxu0
      %814 = vmatprep.mubr.bf16.mxu0 %v385
      %815 = vmatmul.mubr.bf16.gmra.mrb[0].mxu0 %v384
      %v816 = vpop.f32.mrb[0].mxu0
      %v817 = vadd.f32 %v491, %v816
      %v818 = vpop.f32.mrb[0].mxu0
      %v819 = vpop.f32.mrb[0].mxu0
      %v820 = vadd.f32 %v491, %v819
      %v821 = vpop.f32.mrb[0].mxu0
      %822 = vmatprep.mubr.bf16.mxu0 %v389
      %823 = vmatmul.mubr.bf16.gmra.mrb[0].mxu0 %v388
      %v824 = vpop.f32.mrb[0].mxu0
      %v825 = vadd.f32 %v491, %v824
      %v826 = vpop.f32.mrb[0].mxu0
      %v827 = vpop.f32.mrb[0].mxu0
      %v828 = vadd.f32 %v491, %v827
      %v829 = vpop.f32.mrb[0].mxu0
      %830 = vmatprep.mubr.bf16.mxu0 %v393
      %831 = vmatmul.mubr.bf16.gmra.mrb[0].mxu0 %v392
      %v832 = vpop.f32.mrb[0].mxu0
      %v833 = vadd.f32 %v491, %v832
      %v834 = vpop.f32.mrb[0].mxu0
      %v835 = vpop.f32.mrb[0].mxu0
      %v836 = vadd.f32 %v491, %v835
      %v837 = vpop.f32.mrb[0].mxu0
      %838 = vmatprep.mubr.bf16.mxu0 %v397
      %839 = vmatmul.mubr.bf16.gmra.mrb[0].mxu0 %v396
      %v840 = vpop.f32.mrb[0].mxu0
      %v841 = vadd.f32 %v491, %v840
      %v842 = vpop.f32.mrb[0].mxu0
      %v843 = vpop.f32.mrb[0].mxu0
      %v844 = vadd.f32 %v491, %v843
      %v845 = vpop.f32.mrb[0].mxu0
      %846 = vmatprep.mubr.bf16.mxu0 %v401
      %847 = vmatmul.mubr.bf16.gmra.mrb[0].mxu0 %v400
      %v848 = vpop.f32.mrb[0].mxu0
      %v849 = vadd.f32 %v491, %v848
      %v850 = vpop.f32.mrb[0].mxu0
      %v851 = vpop.f32.mrb[0].mxu0
      %v852 = vadd.f32 %v491, %v851
      %v853 = vpop.f32.mrb[0].mxu0
      %854 = vmatprep.mubr.bf16.mxu0 %v405
      %855 = vmatmul.mubr.bf16.gmra.mrb[0].mxu0 %v404
      %v856 = vpop.f32.mrb[0].mxu0
      %v857 = vadd.f32 %v491, %v856
      %v858 = vpop.f32.mrb[0].mxu0
      %v859 = vpop.f32.mrb[0].mxu0
      %v860 = vadd.f32 %v491, %v859
      %v861 = vpop.f32.mrb[0].mxu0
      %862 = vmatprep.mubr.bf16.mxu0 %v409
      %863 = vmatmul.mubr.bf16.gmra.mrb[0].mxu0 %v408
      %v864 = vpop.f32.mrb[0].mxu0
      %v865 = vadd.f32 %v491, %v864
      %v866 = vpop.f32.mrb[0].mxu0
      %v867 = vpop.f32.mrb[0].mxu0
      %v868 = vadd.f32 %v491, %v867
      %v869 = vpop.f32.mrb[0].mxu0
      %870 = vmatprep.mubr.bf16.mxu0 %v413
      %871 = vmatmul.mubr.bf16.gmra.mrb[0].mxu0 %v412
      %v872 = vpop.f32.mrb[0].mxu0
      %v873 = vadd.f32 %v491, %v872
      %v874 = vpop.f32.mrb[0].mxu0
      %v875 = vpop.f32.mrb[0].mxu0
      %v876 = vadd.f32 %v491, %v875
      %v877 = vpop.f32.mrb[0].mxu0
      %878 = vmatprep.mubr.bf16.mxu0 %v417
      %879 = vmatmul.mubr.bf16.gmra.mrb[0].mxu0 %v416
      %v880 = vpop.f32.mrb[0].mxu0
      %v881 = vadd.f32 %v491, %v880
      %v882 = vpop.f32.mrb[0].mxu0
      %v883 = vpop.f32.mrb[0].mxu0
      %v884 = vadd.f32 %v491, %v883
      %v885 = vpop.f32.mrb[0].mxu0
      %886 = vmatprep.mubr.bf16.mxu0 %v421
      %887 = vmatmul.mubr.bf16.gmra.mrb[0].mxu0 %v420
      %v888 = vpop.f32.mrb[0].mxu0
      %v889 = vadd.f32 %v491, %v888
      %v890 = vpop.f32.mrb[0].mxu0
      %v891 = vpop.f32.mrb[0].mxu0
      %v892 = vadd.f32 %v491, %v891
      %v893 = vpop.f32.mrb[0].mxu0
      %894 = vdwg.mxu0
      %895 = vmatprep.subr.bf16.mxu0 0
      %896 = vmatpush1.bf16.msra.mxu0 %v634
      %897 = vmatprep.subr.bf16.mxu0 0
      %898 = vmatpush1.bf16.msra.mxu0 %v635
      %899 = vmatprep.subr.bf16.mxu0 0
      %900 = vmatpush1.bf16.msra.mxu0 %v636
      %901 = vmatprep.subr.bf16.mxu0 0
      %902 = vmatpush1.bf16.msra.mxu0 %v637
      %903 = vmatprep.subr.bf16.mxu0 0
      %904 = vmatpush1.bf16.msra.mxu0 %v638
      %905 = vmatprep.subr.bf16.mxu0 0
      %906 = vmatpush1.bf16.msra.mxu0 %v639
      %907 = vmatprep.subr.bf16.mxu0 0
      %908 = vmatpush1.bf16.msra.mxu0 %v640
      %909 = vmatprep.subr.bf16.mxu0 0
      %910 = vmatpush1.bf16.msra.mxu0 %v641
      %911 = vmatprep.subr.bf16.mxu0 0
      %912 = vmatpush1.bf16.msra.mxu0 %v642
      %913 = vmatprep.subr.bf16.mxu0 0
      %914 = vmatpush1.bf16.msra.mxu0 %v643
      %915 = vmatprep.subr.bf16.mxu0 0
      %916 = vmatpush1.bf16.msra.mxu0 %v644
      %917 = vmatprep.subr.bf16.mxu0 0
      %918 = vmatpush1.bf16.msra.mxu0 %v645
      %919 = vmatprep.subr.bf16.mxu0 0
      %920 = vmatpush1.bf16.msra.mxu0 %v646
      %921 = vmatprep.subr.bf16.mxu0 0
      %922 = vmatpush1.bf16.msra.mxu0 %v647
      %923 = vmatprep.subr.bf16.mxu0 0
      %924 = vmatpush1.bf16.msra.mxu0 %v648
      %925 = vmatprep.subr.bf16.mxu0 0
      %926 = vmatpush1.bf16.msra.mxu0 %v732
      %927 = vmatprep.mubr.bf16.mxu0 %v683
      %928 = vmatmul.mubr.bf16.gmra.mrb[0].mxu0 %v362
      %v929 = vpop.f32.mrb[0].mxu0
      %v930 = vadd.f32 %v769, %v929
      %v931 = vpop.f32.mrb[0].mxu0
      %v932 = vpop.f32.mrb[0].mxu0
      %v933 = vadd.f32 %v772, %v932
      %v934 = vpop.f32.mrb[0].mxu0
      %935 = vmatprep.mubr.bf16.mxu0 %v686
      %936 = vmatmul.mubr.bf16.gmra.mrb[0].mxu0 %v366
      %v937 = vpop.f32.mrb[0].mxu0
      %v938 = vadd.f32 %v777, %v937
      %v939 = vpop.f32.mrb[0].mxu0
      %v940 = vpop.f32.mrb[0].mxu0
      %v941 = vadd.f32 %v780, %v940
      %v942 = vpop.f32.mrb[0].mxu0
      %943 = vmatprep.mubr.bf16.mxu0 %v689
      %944 = vmatmul.mubr.bf16.gmra.mrb[0].mxu0 %v370
      %v945 = vpop.f32.mrb[0].mxu0
      %v946 = vadd.f32 %v785, %v945
      %v947 = vpop.f32.mrb[0].mxu0
      %v948 = vpop.f32.mrb[0].mxu0
      %v949 = vadd.f32 %v788, %v948
      %v950 = vpop.f32.mrb[0].mxu0
      %951 = vmatprep.mubr.bf16.mxu0 %v692
      %952 = vmatmul.mubr.bf16.gmra.mrb[0].mxu0 %v374
      %v953 = vpop.f32.mrb[0].mxu0
      %v954 = vadd.f32 %v793, %v953
      %v955 = vpop.f32.mrb[0].mxu0
      %v956 = vpop.f32.mrb[0].mxu0
      %v957 = vadd.f32 %v796, %v956
      %v958 = vpop.f32.mrb[0].mxu0
      %959 = vmatprep.mubr.bf16.mxu0 %v695
      %960 = vmatmul.mubr.bf16.gmra.mrb[0].mxu0 %v378
      %v961 = vpop.f32.mrb[0].mxu0
      %v962 = vadd.f32 %v801, %v961
      %v963 = vpop.f32.mrb[0].mxu0
      %v964 = vpop.f32.mrb[0].mxu0
      %v965 = vadd.f32 %v804, %v964
      %v966 = vpop.f32.mrb[0].mxu0
      %967 = vmatprep.mubr.bf16.mxu0 %v698
      %968 = vmatmul.mubr.bf16.gmra.mrb[0].mxu0 %v382
      %v969 = vpop.f32.mrb[0].mxu0
      %v970 = vadd.f32 %v809, %v969
      %v971 = vpop.f32.mrb[0].mxu0
      %v972 = vpop.f32.mrb[0].mxu0
      %v973 = vadd.f32 %v812, %v972
      %v974 = vpop.f32.mrb[0].mxu0
      %975 = vmatprep.mubr.bf16.mxu0 %v701
      %976 = vmatmul.mubr.bf16.gmra.mrb[0].mxu0 %v386
      %v977 = vpop.f32.mrb[0].mxu0
      %v978 = vadd.f32 %v817, %v977
      %v979 = vpop.f32.mrb[0].mxu0
      %v980 = vpop.f32.mrb[0].mxu0
      %v981 = vadd.f32 %v820, %v980
      %v982 = vpop.f32.mrb[0].mxu0
      %983 = vmatprep.mubr.bf16.mxu0 %v704
      %984 = vmatmul.mubr.bf16.gmra.mrb[0].mxu0 %v390
      %v985 = vpop.f32.mrb[0].mxu0
      %v986 = vadd.f32 %v825, %v985
      %v987 = vpop.f32.mrb[0].mxu0
      %v988 = vpop.f32.mrb[0].mxu0
      %v989 = vadd.f32 %v828, %v988
      %v990 = vpop.f32.mrb[0].mxu0
      %991 = vmatprep.mubr.bf16.mxu0 %v707
      %992 = vmatmul.mubr.bf16.gmra.mrb[0].mxu0 %v394
      %v993 = vpop.f32.mrb[0].mxu0
      %v994 = vadd.f32 %v833, %v993
      %v995 = vpop.f32.mrb[0].mxu0
      %v996 = vpop.f32.mrb[0].mxu0
      %v997 = vadd.f32 %v836, %v996
      %v998 = vpop.f32.mrb[0].mxu0
      %999 = vmatprep.mubr.bf16.mxu0 %v710
      %1000 = vmatmul.mubr.bf16.gmra.mrb[0].mxu0 %v398
      %v1001 = vpop.f32.mrb[0].mxu0
      %v1002 = vadd.f32 %v841, %v1001
      %v1003 = vpop.f32.mrb[0].mxu0
      %v1004 = vpop.f32.mrb[0].mxu0
      %v1005 = vadd.f32 %v844, %v1004
      %v1006 = vpop.f32.mrb[0].mxu0
      %1007 = vmatprep.mubr.bf16.mxu0 %v713
      %1008 = vmatmul.mubr.bf16.gmra.mrb[0].mxu0 %v402
      %v1009 = vpop.f32.mrb[0].mxu0
      %v1010 = vadd.f32 %v849, %v1009
      %v1011 = vpop.f32.mrb[0].mxu0
      %v1012 = vpop.f32.mrb[0].mxu0
      %v1013 = vadd.f32 %v852, %v1012
      %v1014 = vpop.f32.mrb[0].mxu0
      %1015 = vmatprep.mubr.bf16.mxu0 %v716
      %1016 = vmatmul.mubr.bf16.gmra.mrb[0].mxu0 %v406
      %v1017 = vpop.f32.mrb[0].mxu0
      %v1018 = vadd.f32 %v857, %v1017
      %v1019 = vpop.f32.mrb[0].mxu0
      %v1020 = vpop.f32.mrb[0].mxu0
      %v1021 = vadd.f32 %v860, %v1020
      %v1022 = vpop.f32.mrb[0].mxu0
      %1023 = vmatprep.mubr.bf16.mxu0 %v719
      %1024 = vmatmul.mubr.bf16.gmra.mrb[0].mxu0 %v410
      %v1025 = vpop.f32.mrb[0].mxu0
      %v1026 = vadd.f32 %v865, %v1025
      %v1027 = vpop.f32.mrb[0].mxu0
      %v1028 = vpop.f32.mrb[0].mxu0
      %v1029 = vadd.f32 %v868, %v1028
      %v1030 = vpop.f32.mrb[0].mxu0
      %1031 = vmatprep.mubr.bf16.mxu0 %v722
      %1032 = vmatmul.mubr.bf16.gmra.mrb[0].mxu0 %v414
      %v1033 = vpop.f32.mrb[0].mxu0
      %v1034 = vadd.f32 %v873, %v1033
      %v1035 = vpop.f32.mrb[0].mxu0
      %v1036 = vpop.f32.mrb[0].mxu0
      %v1037 = vadd.f32 %v876, %v1036
      %v1038 = vpop.f32.mrb[0].mxu0
      %1039 = vmatprep.mubr.bf16.mxu0 %v725
      %1040 = vmatmul.mubr.bf16.gmra.mrb[0].mxu0 %v418
      %v1041 = vpop.f32.mrb[0].mxu0
      %v1042 = vadd.f32 %v881, %v1041
      %v1043 = vpop.f32.mrb[0].mxu0
      %v1044 = vpop.f32.mrb[0].mxu0
      %v1045 = vadd.f32 %v884, %v1044
      %v1046 = vpop.f32.mrb[0].mxu0
      %1047 = vmatprep.mubr.bf16.mxu0 %v728
      %1048 = vmatmul.mubr.bf16.gmra.mrb[0].mxu0 %v422
      %v1049 = vpop.f32.mrb[0].mxu0
      %v1050 = vadd.f32 %v889, %v1049
      %v1051 = vpop.f32.mrb[0].mxu0
      %v1052 = vpop.f32.mrb[0].mxu0
      %v1053 = vadd.f32 %v892, %v1052
      %v1054 = vpop.f32.mrb[0].mxu0
      %1055 = vdwg.mxu0
      %v1056 = vmax.f32 %v930, 0.0
      %v1057 = vmax.f32 %v933, 0.0
      %v1058 = vmax.f32 %v938, 0.0
      %v1059 = vmax.f32 %v941, 0.0
      %v1060 = vmax.f32 %v946, 0.0
      %v1061 = vmax.f32 %v949, 0.0
      %v1062 = vmax.f32 %v954, 0.0
      %v1063 = vmax.f32 %v957, 0.0
      %v1064 = vmax.f32 %v962, 0.0
      %v1065 = vmax.f32 %v965, 0.0
      %v1066 = vmax.f32 %v970, 0.0
      %v1067 = vmax.f32 %v973, 0.0
      %v1068 = vmax.f32 %v978, 0.0
      %v1069 = vmax.f32 %v981, 0.0
      %v1070 = vmax.f32 %v986, 0.0
      %v1071 = vmax.f32 %v989, 0.0
      %v1072 = vmax.f32 %v994, 0.0
      %v1073 = vmax.f32 %v997, 0.0
      %v1074 = vmax.f32 %v1002, 0.0
      %v1075 = vmax.f32 %v1005, 0.0
      %v1076 = vmax.f32 %v1010, 0.0
      %v1077 = vmax.f32 %v1013, 0.0
      %v1078 = vmax.f32 %v1018, 0.0
      %v1079 = vmax.f32 %v1021, 0.0
      %v1080 = vmax.f32 %v1026, 0.0
      %v1081 = vmax.f32 %v1029, 0.0
      %v1082 = vmax.f32 %v1034, 0.0
      %v1083 = vmax.f32 %v1037, 0.0
      %v1084 = vmax.f32 %v1042, 0.0
      %v1085 = vmax.f32 %v1045, 0.0
      %v1086 = vmax.f32 %v1050, 0.0
      %v1087 = vmax.f32 %v1053, 0.0
      %v1088 = vpack.c.bf16 %v1057, %v1056
      %v1089 = vpack.c.bf16 %v1059, %v1058
      %v1090 = vpack.c.bf16 %v1061, %v1060
      %v1091 = vpack.c.bf16 %v1063, %v1062
      %v1092 = vpack.c.bf16 %v1065, %v1064
      %v1093 = vpack.c.bf16 %v1067, %v1066
      %v1094 = vpack.c.bf16 %v1069, %v1068
      %v1095 = vpack.c.bf16 %v1071, %v1070
      %v1096 = vpack.c.bf16 %v1073, %v1072
      %v1097 = vpack.c.bf16 %v1075, %v1074
      %v1098 = vpack.c.bf16 %v1077, %v1076
      %v1099 = vpack.c.bf16 %v1079, %v1078
      %v1100 = vpack.c.bf16 %v1081, %v1080
      %v1101 = vpack.c.bf16 %v1083, %v1082
      %v1102 = vpack.c.bf16 %v1085, %v1084
      %v1103 = vpack.c.bf16 %v1087, %v1086
      %v1104 = vld [vmem:[%s3] sm:$0xf]
      %v1105 = vld [vmem:[%s3 + $0x4] sm:$0xf]
      %v1106 = vld [vmem:[%s3 + $0x8] sm:$0xf]
      %v1107 = vld [vmem:[%s3 + $0xc] sm:$0xf]
      %v1108 = vld [vmem:[%s3 + $0x10] sm:$0xf]
      %v1109 = vld [vmem:[%s3 + $0x14] sm:$0xf]
      %v1110 = vld [vmem:[%s3 + $0x18] sm:$0xf]
      %v1111 = vld [vmem:[%s3 + $0x1c] sm:$0xf]
      %v1112 = vld [vmem:[%s3 + $0x20] sm:$0xf]
      %v1113 = vld [vmem:[%s3 + $0x24] sm:$0xf]
      %v1114 = vld [vmem:[%s3 + $0x28] sm:$0xf]
      %v1115 = vld [vmem:[%s3 + $0x2c] sm:$0xf]
      %v1116 = vld [vmem:[%s3 + $0x30] sm:$0xf]
      %v1117 = vld [vmem:[%s3 + $0x34] sm:$0xf]
      %v1118 = vld [vmem:[%s3 + $0x38] sm:$0xf]
      %v1119 = vld [vmem:[%s3 + $0x3c] sm:$0xf]
      %v1120 = vld [vmem:[%s2 + $0x1] sm:$0x1]
      %v1121 = vlaneseq
      %v1122 = vshrl.u32 %v1121, 7
      %v1123 = vsub.s32 0, %v1122
      %v1124 = vrot.slane %v1120, %v1123
      %v1141 = vunpack.c.l.b16 %v1104
      %v1142 = vunpack.c.l.b16 %v1105
      %v1143 = vunpack.c.l.b16 %v1106
      %v1144 = vunpack.c.l.b16 %v1107
      %v1145 = vunpack.c.l.b16 %v1108
      %v1146 = vunpack.c.l.b16 %v1109
      %v1147 = vunpack.c.l.b16 %v1110
      %v1148 = vunpack.c.l.b16 %v1111
      %v1149 = vunpack.c.l.b16 %v1112
      %v1150 = vunpack.c.l.b16 %v1113
      %v1151 = vunpack.c.l.b16 %v1114
      %v1152 = vunpack.c.l.b16 %v1115
      %v1153 = vunpack.c.l.b16 %v1116
      %v1154 = vunpack.c.l.b16 %v1117
      %v1155 = vunpack.c.l.b16 %v1118
      %v1156 = vunpack.c.l.b16 %v1119
      %v1157 = vpack.c.b16 %v1142, %v1141
      %v1158 = vpack.c.b16 %v1144, %v1143
      %v1159 = vpack.c.b16 %v1146, %v1145
      %v1160 = vpack.c.b16 %v1148, %v1147
      %v1161 = vpack.c.b16 %v1150, %v1149
      %v1162 = vpack.c.b16 %v1152, %v1151
      %v1163 = vpack.c.b16 %v1154, %v1153
      %v1164 = vpack.c.b16 %v1156, %v1155
      %1173 = vmatprep.subr.bf16.mxu0 0
      %1174 = vmatpush1.bf16.msra.mxu0 %v1157
      %1175 = vmatprep.subr.bf16.mxu0 0
      %1176 = vmatpush1.bf16.msra.mxu0 %v1158
      %1177 = vmatprep.subr.bf16.mxu0 0
      %1178 = vmatpush1.bf16.msra.mxu0 %v1159
      %1179 = vmatprep.subr.bf16.mxu0 0
      %1180 = vmatpush1.bf16.msra.mxu0 %v1160
      %1181 = vmatprep.subr.bf16.mxu0 0
      %1182 = vmatpush1.bf16.msra.mxu0 %v1161
      %1183 = vmatprep.subr.bf16.mxu0 0
      %1184 = vmatpush1.bf16.msra.mxu0 %v1162
      %1185 = vmatprep.subr.bf16.mxu0 0
      %1186 = vmatpush1.bf16.msra.mxu0 %v1163
      %1187 = vmatprep.subr.bf16.mxu0 0
      %1188 = vmatpush1.bf16.msra.mxu0 %v1164
      %1189 = vmatprep.subr.bf16.mxu0 0
      %1190 = vmatpush1.bf16.msra.mxu0 0
      %1191 = vmatprep.subr.bf16.mxu0 0
      %1192 = vmatpush1.bf16.msra.mxu0 0
      %1193 = vmatprep.subr.bf16.mxu0 0
      %1194 = vmatpush1.bf16.msra.mxu0 0
      %1195 = vmatprep.subr.bf16.mxu0 0
      %1196 = vmatpush1.bf16.msra.mxu0 0
      %1197 = vmatprep.subr.bf16.mxu0 0
      %1198 = vmatpush1.bf16.msra.mxu0 0
      %1199 = vmatprep.subr.bf16.mxu0 0
      %1200 = vmatpush1.bf16.msra.mxu0 0
      %1201 = vmatprep.subr.bf16.mxu0 0
      %1202 = vmatpush1.bf16.msra.mxu0 0
      %1203 = vmatprep.subr.bf16.mxu0 0
      %1204 = vmatpush1.bf16.msra.mxu0 0
      %1205 = vmatprep.mubr.bf16.mxu0 0
      %1206 = vmatmul.mubr.bf16.gmra.mrb[0].mxu0 %v1088
      %v1207 = vpop.f32.mrb[0].mxu0
      %v1208 = vadd.f32 %v1124, %v1207
      %v1209 = vpop.f32.mrb[0].mxu0
      %v1210 = vpop.f32.mrb[0].mxu0
      %v1211 = vadd.f32 %v1124, %v1210
      %v1212 = vpop.f32.mrb[0].mxu0
      %1213 = vmatprep.mubr.bf16.mxu0 0
      %1214 = vmatmul.mubr.bf16.gmra.mrb[0].mxu0 %v1089
      %v1215 = vpop.f32.mrb[0].mxu0
      %v1216 = vadd.f32 %v1124, %v1215
      %v1217 = vpop.f32.mrb[0].mxu0
      %v1218 = vpop.f32.mrb[0].mxu0
      %v1219 = vadd.f32 %v1124, %v1218
      %v1220 = vpop.f32.mrb[0].mxu0
      %1221 = vmatprep.mubr.bf16.mxu0 0
      %1222 = vmatmul.mubr.bf16.gmra.mrb[0].mxu0 %v1090
      %v1223 = vpop.f32.mrb[0].mxu0
      %v1224 = vadd.f32 %v1124, %v1223
      %v1225 = vpop.f32.mrb[0].mxu0
      %v1226 = vpop.f32.mrb[0].mxu0
      %v1227 = vadd.f32 %v1124, %v1226
      %v1228 = vpop.f32.mrb[0].mxu0
      %1229 = vmatprep.mubr.bf16.mxu0 0
      %1230 = vmatmul.mubr.bf16.gmra.mrb[0].mxu0 %v1091
      %v1231 = vpop.f32.mrb[0].mxu0
      %v1232 = vadd.f32 %v1124, %v1231
      %v1233 = vpop.f32.mrb[0].mxu0
      %v1234 = vpop.f32.mrb[0].mxu0
      %v1235 = vadd.f32 %v1124, %v1234
      %v1236 = vpop.f32.mrb[0].mxu0
      %1237 = vmatprep.mubr.bf16.mxu0 0
      %1238 = vmatmul.mubr.bf16.gmra.mrb[0].mxu0 %v1092
      %v1239 = vpop.f32.mrb[0].mxu0
      %v1240 = vadd.f32 %v1124, %v1239
      %v1241 = vpop.f32.mrb[0].mxu0
      %v1242 = vpop.f32.mrb[0].mxu0
      %v1243 = vadd.f32 %v1124, %v1242
      %v1244 = vpop.f32.mrb[0].mxu0
      %1245 = vmatprep.mubr.bf16.mxu0 0
      %1246 = vmatmul.mubr.bf16.gmra.mrb[0].mxu0 %v1093
      %v1247 = vpop.f32.mrb[0].mxu0
      %v1248 = vadd.f32 %v1124, %v1247
      %v1249 = vpop.f32.mrb[0].mxu0
      %v1250 = vpop.f32.mrb[0].mxu0
      %v1251 = vadd.f32 %v1124, %v1250
      %v1252 = vpop.f32.mrb[0].mxu0
      %1253 = vmatprep.mubr.bf16.mxu0 0
      %1254 = vmatmul.mubr.bf16.gmra.mrb[0].mxu0 %v1094
      %v1255 = vpop.f32.mrb[0].mxu0
      %v1256 = vadd.f32 %v1124, %v1255
      %v1257 = vpop.f32.mrb[0].mxu0
      %v1258 = vpop.f32.mrb[0].mxu0
      %v1259 = vadd.f32 %v1124, %v1258
      %v1260 = vpop.f32.mrb[0].mxu0
      %1261 = vmatprep.mubr.bf16.mxu0 0
      %1262 = vmatmul.mubr.bf16.gmra.mrb[0].mxu0 %v1095
      %v1263 = vpop.f32.mrb[0].mxu0
      %v1264 = vadd.f32 %v1124, %v1263
      %v1265 = vpop.f32.mrb[0].mxu0
      %v1266 = vpop.f32.mrb[0].mxu0
      %v1267 = vadd.f32 %v1124, %v1266
      %v1268 = vpop.f32.mrb[0].mxu0
      %1269 = vmatprep.mubr.bf16.mxu0 0
      %1270 = vmatmul.mubr.bf16.gmra.mrb[0].mxu0 %v1096
      %v1271 = vpop.f32.mrb[0].mxu0
      %v1272 = vadd.f32 %v1124, %v1271
      %v1273 = vpop.f32.mrb[0].mxu0
      %v1274 = vpop.f32.mrb[0].mxu0
      %v1275 = vadd.f32 %v1124, %v1274
      %v1276 = vpop.f32.mrb[0].mxu0
      %1277 = vmatprep.mubr.bf16.mxu0 0
      %1278 = vmatmul.mubr.bf16.gmra.mrb[0].mxu0 %v1097
      %v1279 = vpop.f32.mrb[0].mxu0
      %v1280 = vadd.f32 %v1124, %v1279
      %v1281 = vpop.f32.mrb[0].mxu0
      %v1282 = vpop.f32.mrb[0].mxu0
      %v1283 = vadd.f32 %v1124, %v1282
      %v1284 = vpop.f32.mrb[0].mxu0
      %1285 = vmatprep.mubr.bf16.mxu0 0
      %1286 = vmatmul.mubr.bf16.gmra.mrb[0].mxu0 %v1098
      %v1287 = vpop.f32.mrb[0].mxu0
      %v1288 = vadd.f32 %v1124, %v1287
      %v1289 = vpop.f32.mrb[0].mxu0
      %v1290 = vpop.f32.mrb[0].mxu0
      %v1291 = vadd.f32 %v1124, %v1290
      %v1292 = vpop.f32.mrb[0].mxu0
      %1293 = vmatprep.mubr.bf16.mxu0 0
      %1294 = vmatmul.mubr.bf16.gmra.mrb[0].mxu0 %v1099
      %v1295 = vpop.f32.mrb[0].mxu0
      %v1296 = vadd.f32 %v1124, %v1295
      %v1297 = vpop.f32.mrb[0].mxu0
      %v1298 = vpop.f32.mrb[0].mxu0
      %v1299 = vadd.f32 %v1124, %v1298
      %v1300 = vpop.f32.mrb[0].mxu0
      %1301 = vmatprep.mubr.bf16.mxu0 0
      %1302 = vmatmul.mubr.bf16.gmra.mrb[0].mxu0 %v1100
      %v1303 = vpop.f32.mrb[0].mxu0
      %v1304 = vadd.f32 %v1124, %v1303
      %v1305 = vpop.f32.mrb[0].mxu0
      %v1306 = vpop.f32.mrb[0].mxu0
      %v1307 = vadd.f32 %v1124, %v1306
      %v1308 = vpop.f32.mrb[0].mxu0
      %1309 = vmatprep.mubr.bf16.mxu0 0
      %1310 = vmatmul.mubr.bf16.gmra.mrb[0].mxu0 %v1101
      %v1311 = vpop.f32.mrb[0].mxu0
      %v1312 = vadd.f32 %v1124, %v1311
      %v1313 = vpop.f32.mrb[0].mxu0
      %v1314 = vpop.f32.mrb[0].mxu0
      %v1315 = vadd.f32 %v1124, %v1314
      %v1316 = vpop.f32.mrb[0].mxu0
      %1317 = vmatprep.mubr.bf16.mxu0 0
      %1318 = vmatmul.mubr.bf16.gmra.mrb[0].mxu0 %v1102
      %v1319 = vpop.f32.mrb[0].mxu0
      %v1320 = vadd.f32 %v1124, %v1319
      %v1321 = vpop.f32.mrb[0].mxu0
      %v1322 = vpop.f32.mrb[0].mxu0
      %v1323 = vadd.f32 %v1124, %v1322
      %v1324 = vpop.f32.mrb[0].mxu0
      %1325 = vmatprep.mubr.bf16.mxu0 0
      %1326 = vmatmul.mubr.bf16.gmra.mrb[0].mxu0 %v1103
      %v1327 = vpop.f32.mrb[0].mxu0
      %v1328 = vadd.f32 %v1124, %v1327
      %v1329 = vpop.f32.mrb[0].mxu0
      %v1330 = vpop.f32.mrb[0].mxu0
      %v1331 = vadd.f32 %v1124, %v1330
      %v1332 = vpop.f32.mrb[0].mxu0
      %1333 = vdwg.mxu0
      %v1334 = vmax.f32 %v1208, 0.0
      %v1335 = vmax.f32 %v1211, 0.0
      %v1336 = vmax.f32 %v1216, 0.0
      %v1337 = vmax.f32 %v1219, 0.0
      %v1338 = vmax.f32 %v1224, 0.0
      %v1339 = vmax.f32 %v1227, 0.0
      %v1340 = vmax.f32 %v1232, 0.0
      %v1341 = vmax.f32 %v1235, 0.0
      %v1342 = vmax.f32 %v1240, 0.0
      %v1343 = vmax.f32 %v1243, 0.0
      %v1344 = vmax.f32 %v1248, 0.0
      %v1345 = vmax.f32 %v1251, 0.0
      %v1346 = vmax.f32 %v1256, 0.0
      %v1347 = vmax.f32 %v1259, 0.0
      %v1348 = vmax.f32 %v1264, 0.0
      %v1349 = vmax.f32 %v1267, 0.0
      %v1350 = vmax.f32 %v1272, 0.0
      %v1351 = vmax.f32 %v1275, 0.0
      %v1352 = vmax.f32 %v1280, 0.0
      %v1353 = vmax.f32 %v1283, 0.0
      %v1354 = vmax.f32 %v1288, 0.0
      %v1355 = vmax.f32 %v1291, 0.0
      %v1356 = vmax.f32 %v1296, 0.0
      %v1357 = vmax.f32 %v1299, 0.0
      %v1358 = vmax.f32 %v1304, 0.0
      %v1359 = vmax.f32 %v1307, 0.0
      %v1360 = vmax.f32 %v1312, 0.0
      %v1361 = vmax.f32 %v1315, 0.0
      %v1362 = vmax.f32 %v1320, 0.0
      %v1363 = vmax.f32 %v1323, 0.0
      %v1364 = vmax.f32 %v1328, 0.0
      %v1365 = vmax.f32 %v1331, 0.0
      %v1366 = vpack.c.bf16 %v1335, %v1334
      %v1367 = vpack.c.bf16 %v1337, %v1336
      %v1368 = vpack.c.bf16 %v1339, %v1338
      %v1369 = vpack.c.bf16 %v1341, %v1340
      %v1370 = vpack.c.bf16 %v1343, %v1342
      %v1371 = vpack.c.bf16 %v1345, %v1344
      %v1372 = vpack.c.bf16 %v1347, %v1346
      %v1373 = vpack.c.bf16 %v1349, %v1348
      %v1374 = vpack.c.bf16 %v1351, %v1350
      %v1375 = vpack.c.bf16 %v1353, %v1352
      %v1376 = vpack.c.bf16 %v1355, %v1354
      %v1377 = vpack.c.bf16 %v1357, %v1356
      %v1378 = vpack.c.bf16 %v1359, %v1358
      %v1379 = vpack.c.bf16 %v1361, %v1360
      %v1380 = vpack.c.bf16 %v1363, %v1362
      %v1381 = vpack.c.bf16 %v1365, %v1364
      %v1382 = vld [vmem:[%s4] sm:$0xf]
      %v1383 = vld [vmem:[%s4 + $0x4] sm:$0xf]
      %v1384 = vld [vmem:[%s4 + $0x8] sm:$0xf]
      %v1385 = vld [vmem:[%s4 + $0xc] sm:$0xf]
      %v1386 = vld [vmem:[%s4 + $0x10] sm:$0xf]
      %v1387 = vld [vmem:[%s4 + $0x14] sm:$0xf]
      %v1388 = vld [vmem:[%s4 + $0x18] sm:$0xf]
      %v1389 = vld [vmem:[%s4 + $0x1c] sm:$0xf]
      %v1390 = vld [vmem:[%s4 + $0x20] sm:$0xf]
      %v1391 = vld [vmem:[%s4 + $0x24] sm:$0xf]
      %v1392 = vld [vmem:[%s4 + $0x28] sm:$0xf]
      %v1393 = vld [vmem:[%s4 + $0x2c] sm:$0xf]
      %v1394 = vld [vmem:[%s4 + $0x30] sm:$0xf]
      %v1395 = vld [vmem:[%s4 + $0x34] sm:$0xf]
      %v1396 = vld [vmem:[%s4 + $0x38] sm:$0xf]
      %v1397 = vld [vmem:[%s4 + $0x3c] sm:$0xf]
      %v1398 = vld [vmem:[%s2 + $0x2] sm:$0x1]
      %v1399 = vlaneseq
      %v1400 = vshrl.u32 %v1399, 7
      %v1401 = vsub.s32 0, %v1400
      %v1402 = vrot.slane %v1398, %v1401
      %v1419 = vunpack.c.l.b16 %v1382
      %v1420 = vunpack.c.l.b16 %v1383
      %v1421 = vunpack.c.l.b16 %v1384
      %v1422 = vunpack.c.l.b16 %v1385
      %v1423 = vunpack.c.l.b16 %v1386
      %v1424 = vunpack.c.l.b16 %v1387
      %v1425 = vunpack.c.l.b16 %v1388
      %v1426 = vunpack.c.l.b16 %v1389
      %v1427 = vunpack.c.l.b16 %v1390
      %v1428 = vunpack.c.l.b16 %v1391
      %v1429 = vunpack.c.l.b16 %v1392
      %v1430 = vunpack.c.l.b16 %v1393
      %v1431 = vunpack.c.l.b16 %v1394
      %v1432 = vunpack.c.l.b16 %v1395
      %v1433 = vunpack.c.l.b16 %v1396
      %v1434 = vunpack.c.l.b16 %v1397
      %v1435 = vpack.c.b16 %v1420, %v1419
      %v1436 = vpack.c.b16 %v1422, %v1421
      %v1437 = vpack.c.b16 %v1424, %v1423
      %v1438 = vpack.c.b16 %v1426, %v1425
      %v1439 = vpack.c.b16 %v1428, %v1427
      %v1440 = vpack.c.b16 %v1430, %v1429
      %v1441 = vpack.c.b16 %v1432, %v1431
      %v1442 = vpack.c.b16 %v1434, %v1433
      %1451 = vmatprep.subr.bf16.mxu0 0
      %1452 = vmatpush1.bf16.msra.mxu0 %v1435
      %1453 = vmatprep.subr.bf16.mxu0 0
      %1454 = vmatpush1.bf16.msra.mxu0 %v1436
      %1455 = vmatprep.subr.bf16.mxu0 0
      %1456 = vmatpush1.bf16.msra.mxu0 %v1437
      %1457 = vmatprep.subr.bf16.mxu0 0
      %1458 = vmatpush1.bf16.msra.mxu0 %v1438
      %1459 = vmatprep.subr.bf16.mxu0 0
      %1460 = vmatpush1.bf16.msra.mxu0 %v1439
      %1461 = vmatprep.subr.bf16.mxu0 0
      %1462 = vmatpush1.bf16.msra.mxu0 %v1440
      %1463 = vmatprep.subr.bf16.mxu0 0
      %1464 = vmatpush1.bf16.msra.mxu0 %v1441
      %1465 = vmatprep.subr.bf16.mxu0 0
      %1466 = vmatpush1.bf16.msra.mxu0 %v1442
      %1467 = vmatprep.subr.bf16.mxu0 0
      %1468 = vmatpush1.bf16.msra.mxu0 0
      %1469 = vmatprep.subr.bf16.mxu0 0
      %1470 = vmatpush1.bf16.msra.mxu0 0
      %1471 = vmatprep.subr.bf16.mxu0 0
      %1472 = vmatpush1.bf16.msra.mxu0 0
      %1473 = vmatprep.subr.bf16.mxu0 0
      %1474 = vmatpush1.bf16.msra.mxu0 0
      %1475 = vmatprep.subr.bf16.mxu0 0
      %1476 = vmatpush1.bf16.msra.mxu0 0
      %1477 = vmatprep.subr.bf16.mxu0 0
      %1478 = vmatpush1.bf16.msra.mxu0 0
      %1479 = vmatprep.subr.bf16.mxu0 0
      %1480 = vmatpush1.bf16.msra.mxu0 0
      %1481 = vmatprep.subr.bf16.mxu0 0
      %1482 = vmatpush1.bf16.msra.mxu0 0
      %1483 = vmatprep.mubr.bf16.mxu0 0
      %1484 = vmatmul.mubr.bf16.gmra.mrb[0].mxu0 %v1366
      %v1485 = vpop.f32.mrb[0].mxu0
      %v1486 = vadd.f32 %v1402, %v1485
      %v1487 = vpop.f32.mrb[0].mxu0
      %v1488 = vpop.f32.mrb[0].mxu0
      %v1489 = vadd.f32 %v1402, %v1488
      %v1490 = vpop.f32.mrb[0].mxu0
      %1491 = vmatprep.mubr.bf16.mxu0 0
      %1492 = vmatmul.mubr.bf16.gmra.mrb[0].mxu0 %v1367
      %v1493 = vpop.f32.mrb[0].mxu0
      %v1494 = vadd.f32 %v1402, %v1493
      %v1495 = vpop.f32.mrb[0].mxu0
      %v1496 = vpop.f32.mrb[0].mxu0
      %v1497 = vadd.f32 %v1402, %v1496
      %v1498 = vpop.f32.mrb[0].mxu0
      %1499 = vmatprep.mubr.bf16.mxu0 0
      %1500 = vmatmul.mubr.bf16.gmra.mrb[0].mxu0 %v1368
      %v1501 = vpop.f32.mrb[0].mxu0
      %v1502 = vadd.f32 %v1402, %v1501
      %v1503 = vpop.f32.mrb[0].mxu0
      %v1504 = vpop.f32.mrb[0].mxu0
      %v1505 = vadd.f32 %v1402, %v1504
      %v1506 = vpop.f32.mrb[0].mxu0
      %1507 = vmatprep.mubr.bf16.mxu0 0
      %1508 = vmatmul.mubr.bf16.gmra.mrb[0].mxu0 %v1369
      %v1509 = vpop.f32.mrb[0].mxu0
      %v1510 = vadd.f32 %v1402, %v1509
      %v1511 = vpop.f32.mrb[0].mxu0
      %v1512 = vpop.f32.mrb[0].mxu0
      %v1513 = vadd.f32 %v1402, %v1512
      %v1514 = vpop.f32.mrb[0].mxu0
      %1515 = vmatprep.mubr.bf16.mxu0 0
      %1516 = vmatmul.mubr.bf16.gmra.mrb[0].mxu0 %v1370
      %v1517 = vpop.f32.mrb[0].mxu0
      %v1518 = vadd.f32 %v1402, %v1517
      %v1519 = vpop.f32.mrb[0].mxu0
      %v1520 = vpop.f32.mrb[0].mxu0
      %v1521 = vadd.f32 %v1402, %v1520
      %v1522 = vpop.f32.mrb[0].mxu0
      %1523 = vmatprep.mubr.bf16.mxu0 0
      %1524 = vmatmul.mubr.bf16.gmra.mrb[0].mxu0 %v1371
      %v1525 = vpop.f32.mrb[0].mxu0
      %v1526 = vadd.f32 %v1402, %v1525
      %v1527 = vpop.f32.mrb[0].mxu0
      %v1528 = vpop.f32.mrb[0].mxu0
      %v1529 = vadd.f32 %v1402, %v1528
      %v1530 = vpop.f32.mrb[0].mxu0
      %1531 = vmatprep.mubr.bf16.mxu0 0
      %1532 = vmatmul.mubr.bf16.gmra.mrb[0].mxu0 %v1372
      %v1533 = vpop.f32.mrb[0].mxu0
      %v1534 = vadd.f32 %v1402, %v1533
      %v1535 = vpop.f32.mrb[0].mxu0
      %v1536 = vpop.f32.mrb[0].mxu0
      %v1537 = vadd.f32 %v1402, %v1536
      %v1538 = vpop.f32.mrb[0].mxu0
      %1539 = vmatprep.mubr.bf16.mxu0 0
      %1540 = vmatmul.mubr.bf16.gmra.mrb[0].mxu0 %v1373
      %v1541 = vpop.f32.mrb[0].mxu0
      %v1542 = vadd.f32 %v1402, %v1541
      %v1543 = vpop.f32.mrb[0].mxu0
      %v1544 = vpop.f32.mrb[0].mxu0
      %v1545 = vadd.f32 %v1402, %v1544
      %v1546 = vpop.f32.mrb[0].mxu0
      %1547 = vmatprep.mubr.bf16.mxu0 0
      %1548 = vmatmul.mubr.bf16.gmra.mrb[0].mxu0 %v1374
      %v1549 = vpop.f32.mrb[0].mxu0
      %v1550 = vadd.f32 %v1402, %v1549
      %v1551 = vpop.f32.mrb[0].mxu0
      %v1552 = vpop.f32.mrb[0].mxu0
      %v1553 = vadd.f32 %v1402, %v1552
      %v1554 = vpop.f32.mrb[0].mxu0
      %1555 = vmatprep.mubr.bf16.mxu0 0
      %1556 = vmatmul.mubr.bf16.gmra.mrb[0].mxu0 %v1375
      %v1557 = vpop.f32.mrb[0].mxu0
      %v1558 = vadd.f32 %v1402, %v1557
      %v1559 = vpop.f32.mrb[0].mxu0
      %v1560 = vpop.f32.mrb[0].mxu0
      %v1561 = vadd.f32 %v1402, %v1560
      %v1562 = vpop.f32.mrb[0].mxu0
      %1563 = vmatprep.mubr.bf16.mxu0 0
      %1564 = vmatmul.mubr.bf16.gmra.mrb[0].mxu0 %v1376
      %v1565 = vpop.f32.mrb[0].mxu0
      %v1566 = vadd.f32 %v1402, %v1565
      %v1567 = vpop.f32.mrb[0].mxu0
      %v1568 = vpop.f32.mrb[0].mxu0
      %v1569 = vadd.f32 %v1402, %v1568
      %v1570 = vpop.f32.mrb[0].mxu0
      %1571 = vmatprep.mubr.bf16.mxu0 0
      %1572 = vmatmul.mubr.bf16.gmra.mrb[0].mxu0 %v1377
      %v1573 = vpop.f32.mrb[0].mxu0
      %v1574 = vadd.f32 %v1402, %v1573
      %v1575 = vpop.f32.mrb[0].mxu0
      %v1576 = vpop.f32.mrb[0].mxu0
      %v1577 = vadd.f32 %v1402, %v1576
      %v1578 = vpop.f32.mrb[0].mxu0
      %1579 = vmatprep.mubr.bf16.mxu0 0
      %1580 = vmatmul.mubr.bf16.gmra.mrb[0].mxu0 %v1378
      %v1581 = vpop.f32.mrb[0].mxu0
      %v1582 = vadd.f32 %v1402, %v1581
      %v1583 = vpop.f32.mrb[0].mxu0
      %v1584 = vpop.f32.mrb[0].mxu0
      %v1585 = vadd.f32 %v1402, %v1584
      %v1586 = vpop.f32.mrb[0].mxu0
      %1587 = vmatprep.mubr.bf16.mxu0 0
      %1588 = vmatmul.mubr.bf16.gmra.mrb[0].mxu0 %v1379
      %v1589 = vpop.f32.mrb[0].mxu0
      %v1590 = vadd.f32 %v1402, %v1589
      %v1591 = vpop.f32.mrb[0].mxu0
      %v1592 = vpop.f32.mrb[0].mxu0
      %v1593 = vadd.f32 %v1402, %v1592
      %v1594 = vpop.f32.mrb[0].mxu0
      %1595 = vmatprep.mubr.bf16.mxu0 0
      %1596 = vmatmul.mubr.bf16.gmra.mrb[0].mxu0 %v1380
      %v1597 = vpop.f32.mrb[0].mxu0
      %v1598 = vadd.f32 %v1402, %v1597
      %v1599 = vpop.f32.mrb[0].mxu0
      %v1600 = vpop.f32.mrb[0].mxu0
      %v1601 = vadd.f32 %v1402, %v1600
      %v1602 = vpop.f32.mrb[0].mxu0
      %1603 = vmatprep.mubr.bf16.mxu0 0
      %1604 = vmatmul.mubr.bf16.gmra.mrb[0].mxu0 %v1381
      %v1605 = vpop.f32.mrb[0].mxu0
      %v1606 = vadd.f32 %v1402, %v1605
      %v1607 = vpop.f32.mrb[0].mxu0
      %v1608 = vpop.f32.mrb[0].mxu0
      %v1609 = vadd.f32 %v1402, %v1608
      %v1610 = vpop.f32.mrb[0].mxu0
      %1611 = vdwg.mxu0
      %1612 = vst [vmem:[%s229] sm:$0xff] %v1486
      %1613 = vst [vmem:[%s229 + $0x8] sm:$0xff] %v1489
      %1614 = vst [vmem:[%s229 + $0x10] sm:$0xff] %v1494
      %1615 = vst [vmem:[%s229 + $0x18] sm:$0xff] %v1497
      %1616 = vst [vmem:[%s229 + $0x20] sm:$0xff] %v1502
      %1617 = vst [vmem:[%s229 + $0x28] sm:$0xff] %v1505
      %1618 = vst [vmem:[%s229 + $0x30] sm:$0xff] %v1510
      %1619 = vst [vmem:[%s229 + $0x38] sm:$0xff] %v1513
      %1620 = vst [vmem:[%s229 + $0x40] sm:$0xff] %v1518
      %1621 = vst [vmem:[%s229 + $0x48] sm:$0xff] %v1521
      %1622 = vst [vmem:[%s229 + $0x50] sm:$0xff] %v1526
      %1623 = vst [vmem:[%s229 + $0x58] sm:$0xff] %v1529
      %1624 = vst [vmem:[%s229 + $0x60] sm:$0xff] %v1534
      %1625 = vst [vmem:[%s229 + $0x68] sm:$0xff] %v1537
      %1626 = vst [vmem:[%s229 + $0x70] sm:$0xff] %v1542
      %1627 = vst [vmem:[%s229 + $0x78] sm:$0xff] %v1545
      %1628 = vst [vmem:[%s229 + $0x80] sm:$0xff] %v1550
      %1629 = vst [vmem:[%s229 + $0x88] sm:$0xff] %v1553
      %1630 = vst [vmem:[%s229 + $0x90] sm:$0xff] %v1558
      %1631 = vst [vmem:[%s229 + $0x98] sm:$0xff] %v1561
      %1632 = vst [vmem:[%s229 + $0xa0] sm:$0xff] %v1566
      %1633 = vst [vmem:[%s229 + $0xa8] sm:$0xff] %v1569
      %1634 = vst [vmem:[%s229 + $0xb0] sm:$0xff] %v1574
      %1635 = vst [vmem:[%s229 + $0xb8] sm:$0xff] %v1577
      %1636 = vst [vmem:[%s229 + $0xc0] sm:$0xff] %v1582
      %1637 = vst [vmem:[%s229 + $0xc8] sm:$0xff] %v1585
      %1638 = vst [vmem:[%s229 + $0xd0] sm:$0xff] %v1590
      %1639 = vst [vmem:[%s229 + $0xd8] sm:$0xff] %v1593
      %1640 = vst [vmem:[%s229 + $0xe0] sm:$0xff] %v1598
      %1641 = vst [vmem:[%s229 + $0xe8] sm:$0xff] %v1601
      %1642 = vst [vmem:[%s229 + $0xf0] sm:$0xff] %v1606
      %1643 = vst [vmem:[%s229 + $0xf8] sm:$0xff] %v1609
      %s1644 = smul.u32 32, %s16
      %p1645 = scmp.lt.s32.totalorder %s1644, 127
      %s1646 = scalar_select %p1645, %s1644, 127
      %s1647 = smul.addr %s1646, 8
      %s1648 = scalar_lea.vmem %s5, %s1647
      // Predicated region
      $region41: #{mc_init_embedding.1} parent=39 // pred_check
        %p1649 = pneg %p144
      $region42: #{mc_init_embedding.1} parent=39 // pred_check_branch
        %1651 = sbr.rel (%p1649) target = $region44
      $region43: #{mc_init_embedding.1} parent=39 // pred_region
        %s1652 = smul.u32 32, %s16
      $region44: #{mc_init_embedding.1} parent=39 // pred_fallthru
        _
    $region40: #{mc_init_embedding.1} parent=5 // pred_fallthru
      _
    %p1653 = scmp.le.s32.totalorder 2, %s11
    // Predicated region
    $region45: #{mc_init_embedding.1} parent=5 // pred_check
      %p1654 = pneg %p1653
    $region46: #{mc_init_embedding.1} parent=5 // pred_check_branch
      %1656 = sbr.rel (%p1654) target = $region48
    $region47: #{mc_init_embedding.1} parent=5 // pred_region
      %s1657 = ssub.s32 %s11, 2
      // Predicated region
      $region49: #{mc_init_embedding.1} parent=47 // pred_check
        %p1658 = pneg %p150
      $region50: #{mc_init_embedding.1} parent=47 // pred_check_branch
        %1660 = sbr.rel (%p1658) target = $region52
      $region51: #{mc_init_embedding.1} parent=47 // pred_region
        %s1661 = smul.u32 32, %s17
        %p1662 = scmp.lt.s32.totalorder %s1661, 127
        %s1663 = scalar_select %p1662, %s1661, 127
        %s1664 = smul.addr %s1663, 8
        %s1665 = scalar_lea.vmem %s5, %s1664
      $region52: #{mc_init_embedding.1} parent=47 // pred_fallthru
        _
    $region48: #{mc_init_embedding.1} parent=5 // pred_fallthru
      _
  $region6: #{mc_init_embedding.1} parent=0 // loop_footer
    %s15 = sadd.s32 1, %s11
  $region7: #{mc_init_embedding.1} parent=0 // loop_footer_branch
    %10 = sbr.rel target = $region3
  $region8: #{mc_init_embedding.1} parent=0 // loop_exit
    _

</llo_original>
